<compile_context>
chip_gen: v7x
topology: tpu7x:2x2x1
jax: 0.10.0
libtpu: 0.0.40
codegen_flags: <defaults>
</compile_context>

<pallas_src>
import jax
import jax.numpy as jnp
from jax import lax
from jax.experimental import pallas as pl
from jax.experimental.pallas import tpu as pltpu

# ----- small, forward-consistent config (original: E=100, H=300) -----
VOCAB = 50
EMBED_DIM = 16          # E
HIDDEN_DIM = 32         # H  (4H = 128 -> lane-aligned gate block)
NUM_CLASS = 3
B = 2
L_LEFT = 8
L_RIGHT = 8
L_ASP = 4
FEAT = 2 * EMBED_DIM    # original LSTM input dim (embedding concat v_target)


# ---------------------------------------------------------------------------
# Fused Pallas kernel: one grid point = one direction (left / right).
#   - whole sequence resident in VMEM, unrolled in-kernel time loop
#   - one fused [B, E+H] x [E+H, 4H] matmul per step
#   - per-direction partial dense logits written at the end
# ---------------------------------------------------------------------------
def tc_lstm_fused_kernel(x_ref, len_ref, w_ref, beff_ref, wd_ref, bd_ref,
                         out_ref):
    """Refs (direction dim squeezed away by BlockSpec):
       x_ref    [T, B, E]    time-major embeddings for this direction
       len_ref  [B, 1]       valid sequence lengths (int32)
       w_ref    [E+H, 4H]    fused [W_ih[:E]; W_hh]
       beff_ref [B, 4H]      bias + v_target @ W_ih[E:]  (time-constant term)
       wd_ref   [H, C]       this direction's slice of the dense weight
       bd_ref   [1, C]       dense bias for direction 0, zeros for direction 1
       out_ref  [B, C]       partial logits for this direction
    """
    T = x_ref.shape[0]
    Bx = out_ref.shape[0]
    H = wd_ref.shape[0]

    # Hoist all time-invariant loads out of the recurrence (one load each).
    lens = len_ref[...]                                   # [B, 1] int32
    w = w_ref[...]                                        # [E+H, 4H]
    b_eff = beff_ref[...]                                 # [B, 4H]

    def step(t, carry):
        h, c = carry
        x_t = x_ref[t]                                    # [B, E]
        xh = jnp.concatenate([x_t, h], axis=-1)           # [B, E+H]
        z = jnp.dot(xh, w, preferred_element_type=jnp.float32) + b_eff
        i = jax.nn.sigmoid(z[:, 0:H])                     # PyTorch gate order i,f,g,o
        f = jax.nn.sigmoid(z[:, H:2 * H])
        g = jnp.tanh(z[:, 2 * H:3 * H])
        o = jax.nn.sigmoid(z[:, 3 * H:4 * H])
        c_new = f * c + i * g
        h_new = o * jnp.tanh(c_new)
        mask = lens > t                                   # packed-sequence masking
        return jnp.where(mask, h_new, h), jnp.where(mask, c_new, c)

    h0 = jnp.zeros((Bx, H), jnp.float32)
    c0 = jnp.zeros((Bx, H), jnp.float32)
    h_n, _ = lax.fori_loop(0, T, step, (h0, c0), unroll=True)

    # Fused (partial) dense projection for this direction.
    out_ref[...] = (jnp.dot(h_n, wd_ref[...], preferred_element_type=jnp.float32)
                    + bd_ref[...])


# ---------------------------------------------------------------------------
# TC_LSTM forward: glue in JAX, everything hot in ONE pallas_call.
# ---------------------------------------------------------------------------
def tc_lstm_forward(params, inputs):
    E, H, C = EMBED_DIM, HIDDEN_DIM, NUM_CLASS
    x_l_ids, x_r_ids, asp_ids = inputs["x_left"], inputs["x_right"], inputs["aspect"]

    x_l_len = jnp.sum(x_l_ids != 0, axis=-1).astype(jnp.int32)
    x_r_len = jnp.sum(x_r_ids != 0, axis=-1).astype(jnp.int32)
    # NB: matches PyTorch exactly — sums over all aspect rows (incl. padding
    # embeddings) and divides by the count of nonzero tokens.
    target_len = jnp.sum(asp_ids != 0, axis=-1).astype(jnp.float32)[:, None]

    emb = params["embedding"]
    x_l = emb[x_l_ids]                                    # [B, Tl, E]
    x_r = emb[x_r_ids]                                    # [B, Tr, E]
    target = emb[asp_ids]                                 # [B, La, E]
    v_target = target.sum(axis=1) / target_len            # [B, E]

    Bx = x_l.shape[0]
    T = max(x_l.shape[1], x_r.shape[1])

    def pad_time(x):                                      # padded steps are masked out
        return jnp.pad(x, ((0, 0), (0, T - x.shape[1]), (0, 0)))

    # Time-major, stacked over direction: [2, T, B, E]
    x_seq = jnp.stack([jnp.transpose(pad_time(x_l), (1, 0, 2)),
                       jnp.transpose(pad_time(x_r), (1, 0, 2))], axis=0)
    lens = jnp.stack([x_l_len, x_r_len], axis=0).reshape(2, Bx, 1)

    def prep_dir(w_ih, w_hh, b):
        # z_t = [x_t, v_target] @ W_ih + h @ W_hh + b
        #     = [x_t, h] @ [[W_ih[:E]]; [W_hh]] + (b + v_target @ W_ih[E:])
        w_comb = jnp.concatenate([w_ih[:E], w_hh], axis=0)        # [E+H, 4H]
        b_eff = b[None, :] + v_target @ w_ih[E:]                  # [B, 4H]
        return w_comb, b_eff

    w_l, beff_l = prep_dir(params["w_ih_l"], params["w_hh_l"], params["b_l"])
    w_r, beff_r = prep_dir(params["w_ih_r"], params["w_hh_r"], params["b_r"])
    w_comb = jnp.stack([w_l, w_r], axis=0)                        # [2, E+H, 4H]
    b_eff = jnp.stack([beff_l, beff_r], axis=0)                   # [2, B, 4H]

    # dense(concat(h_l, h_r)) = h_l @ Wd[:H] + h_r @ Wd[H:] + b_dense
    wd = jnp.stack([params["w_dense"][:H], params["w_dense"][H:]], axis=0)   # [2, H, C]
    bd = jnp.stack([params["b_dense"].reshape(1, C),
                    jnp.zeros((1, C), jnp.float32)], axis=0)                 # [2, 1, C]

    partials = pl.pallas_call(
        tc_lstm_fused_kernel,
        out_shape=jax.ShapeDtypeStruct((2, Bx, C), jnp.float32),
        grid_spec=pltpu.PrefetchScalarGridSpec(
            num_scalar_prefetch=0,
            grid=(2,),                                     # direction axis only
            in_specs=[
                pl.BlockSpec((None, T, Bx, E), lambda d: (d, 0, 0, 0)),   # x seq
                pl.BlockSpec((None, Bx, 1), lambda d: (d, 0, 0)),         # lengths
                pl.BlockSpec((None, E + H, 4 * H), lambda d: (d, 0, 0)),  # fused W
                pl.BlockSpec((None, Bx, 4 * H), lambda d: (d, 0, 0)),     # eff. bias
                pl.BlockSpec((None, H, C), lambda d: (d, 0, 0)),          # dense W half
                pl.BlockSpec((None, 1, C), lambda d: (d, 0, 0)),          # dense bias
            ],
            out_specs=pl.BlockSpec((None, Bx, C), lambda d: (d, 0, 0)),
        ),
        compiler_params=pltpu.CompilerParams(
            dimension_semantics=("parallel",)),            # left/right on separate TCs (v7x)
    )(x_seq, lens, w_comb, b_eff, wd, bd)

    return partials[0] + partials[1]                       # [B, num_class]


# ---------------------------------------------------------------------------
# Pure-JAX reference (mirrors the PyTorch forward) for a correctness check.
# ---------------------------------------------------------------------------
def _tc_lstm_reference(params, inputs):
    E, H = EMBED_DIM, HIDDEN_DIM
    x_l_ids, x_r_ids, asp_ids = inputs["x_left"], inputs["x_right"], inputs["aspect"]
    x_l_len = jnp.sum(x_l_ids != 0, axis=-1).astype(jnp.int32)
    x_r_len = jnp.sum(x_r_ids != 0, axis=-1).astype(jnp.int32)
    target_len = jnp.sum(asp_ids != 0, axis=-1).astype(jnp.float32)[:, None, None]
    emb = params["embedding"]
    x_l, x_r, target = emb[x_l_ids], emb[x_r_ids], emb[asp_ids]
    v_target = target.sum(axis=1, keepdims=True) / target_len
    x_l = jnp.concatenate(
        [x_l, jnp.broadcast_to(v_target, (x_l.shape[0], x_l.shape[1], E))], axis=2)
    x_r = jnp.concatenate(
        [x_r, jnp.broadcast_to(v_target, (x_r.shape[0], x_r.shape[1], E))], axis=2)

    def lstm_hn(x, lens, w_ih, w_hh, b):
        Bx, T, _ = x.shape
        h = jnp.zeros((Bx, H), jnp.float32)
        c = jnp.zeros((Bx, H), jnp.float32)
        for t in range(T):
            z = x[:, t] @ w_ih + h @ w_hh + b
            i = jax.nn.sigmoid(z[:, :H])
            f = jax.nn.sigmoid(z[:, H:2 * H])
            g = jnp.tanh(z[:, 2 * H:3 * H])
            o = jax.nn.sigmoid(z[:, 3 * H:])
            c_new = f * c + i * g
            h_new = o * jnp.tanh(c_new)
            m = (lens > t)[:, None]
            h = jnp.where(m, h_new, h)
            c = jnp.where(m, c_new, c)
        return h

    h_l = lstm_hn(x_l, x_l_len, params["w_ih_l"], params["w_hh_l"], params["b_l"])
    h_r = lstm_hn(x_r, x_r_len, params["w_ih_r"], params["w_hh_r"], params["b_r"])
    h_n = jnp.concatenate([h_l, h_r], axis=-1)
    return h_n @ params["w_dense"] + params["b_dense"]


def init_params(key):
    ks = jax.random.split(key, 8)
    s = 0.1
    return {
        "embedding": jax.random.normal(ks[0], (VOCAB, EMBED_DIM), jnp.float32) * s,
        "w_ih_l": jax.random.normal(ks[1], (FEAT, 4 * HIDDEN_DIM), jnp.float32) * s,
        "w_hh_l": jax.random.normal(ks[2], (HIDDEN_DIM, 4 * HIDDEN_DIM), jnp.float32) * s,
        "b_l": jax.random.normal(ks[3], (4 * HIDDEN_DIM,), jnp.float32) * s,
        "w_ih_r": jax.random.normal(ks[4], (FEAT, 4 * HIDDEN_DIM), jnp.float32) * s,
        "w_hh_r": jax.random.normal(ks[5], (HIDDEN_DIM, 4 * HIDDEN_DIM), jnp.float32) * s,
        "b_r": jax.random.normal(ks[6], (4 * HIDDEN_DIM,), jnp.float32) * s,
        "w_dense": jax.random.normal(ks[7], (2 * HIDDEN_DIM, NUM_CLASS), jnp.float32) * s,
        "b_dense": jnp.zeros((NUM_CLASS,), jnp.float32),
    }


if __name__ == "__main__":
    key = jax.random.PRNGKey(0)
    pkey, k1, k2, k3 = jax.random.split(key, 4)
    params = init_params(pkey)

    # Deterministic token ids with trailing zero padding (so lengths < max_len).
    x_left = jax.random.randint(k1, (B, L_LEFT), 1, VOCAB, dtype=jnp.int32)
    x_left = x_left.at[:, 6:].set(0)          # lengths = 6
    x_right = jax.random.randint(k2, (B, L_RIGHT), 1, VOCAB, dtype=jnp.int32)
    x_right = x_right.at[0, 5:].set(0)        # lengths = [5, 8]
    aspect = jax.random.randint(k3, (B, L_ASP), 1, VOCAB, dtype=jnp.int32)
    aspect = aspect.at[:, 3:].set(0)          # aspect lengths = 3

    inputs = {"x_left": x_left, "x_right": x_right, "aspect": aspect}

    out = jax.block_until_ready(tc_lstm_forward(params, inputs))
    assert out.shape == (B, NUM_CLASS)

    ref = jax.block_until_ready(_tc_lstm_reference(params, inputs))
    assert jnp.allclose(out, ref, rtol=2e-4, atol=2e-4), (out, ref)

    print("KERNEL_OK")
</pallas_src>

<mosaic_0001>
module attributes {stable_mosaic.version = 11 : i64} {
  func.func @tc_lstm_fused_kernel(%arg0: i32, %arg1: memref<1x8x2x16xf32, #tpu.memory_space<vmem>>, %arg2: memref<1x2x1xi32, #tpu.memory_space<vmem>>, %arg3: memref<1x48x128xf32, #tpu.memory_space<vmem>>, %arg4: memref<1x2x128xf32, #tpu.memory_space<vmem>>, %arg5: memref<1x32x3xf32, #tpu.memory_space<vmem>>, %arg6: memref<1x1x3xf32, #tpu.memory_space<vmem>>, %arg7: memref<1x2x3xf32, #tpu.memory_space<vmem>>) attributes {dimension_semantics = [#tpu.dimension_semantics<parallel>], iteration_bounds = array<i64: 2>, scalar_prefetch = 0 : i64, scratch_operands = 0 : i64, tpu.core_type = #tpu.core_type<tc>, window_params = [{transform_indices = @transform_0, window_bounds = array<i64: 1, 8, 2, 16>}, {transform_indices = @transform_1, window_bounds = array<i64: 1, 2, 1>}, {transform_indices = @transform_2, window_bounds = array<i64: 1, 48, 128>}, {transform_indices = @transform_3, window_bounds = array<i64: 1, 2, 128>}, {transform_indices = @transform_4, window_bounds = array<i64: 1, 32, 3>}, {transform_indices = @transform_5, window_bounds = array<i64: 1, 1, 3>}, {transform_indices = @transform_6, window_bounds = array<i64: 1, 2, 3>}]} {
    %c0 = arith.constant 0 : index
    %c0_0 = arith.constant 0 : index
    %c0_1 = arith.constant 0 : index
    %0 = vector.load %arg2[%c0, %c0_0, %c0_1] : memref<1x2x1xi32, #tpu.memory_space<vmem>>, vector<1x2x1xi32>
    %1 = vector.shape_cast %0 : vector<1x2x1xi32> to vector<2x1xi32>
    %c0_2 = arith.constant 0 : index
    %c0_3 = arith.constant 0 : index
    %c0_4 = arith.constant 0 : index
    %2 = vector.load %arg3[%c0_2, %c0_3, %c0_4] : memref<1x48x128xf32, #tpu.memory_space<vmem>>, vector<1x48x128xf32>
    %3 = vector.shape_cast %2 : vector<1x48x128xf32> to vector<48x128xf32>
    %c0_5 = arith.constant 0 : index
    %c0_6 = arith.constant 0 : index
    %c0_7 = arith.constant 0 : index
    %4 = vector.load %arg4[%c0_5, %c0_6, %c0_7] : memref<1x2x128xf32, #tpu.memory_space<vmem>>, vector<1x2x128xf32>
    %5 = vector.shape_cast %4 : vector<1x2x128xf32> to vector<2x128xf32>
    %cst = arith.constant 0.000000e+00 : f32
    %6 = vector.broadcast %cst : f32 to vector<2x32xf32>
    %cst_8 = arith.constant 0.000000e+00 : f32
    %7 = vector.broadcast %cst_8 : f32 to vector<2x32xf32>
    %c0_i32 = arith.constant 0 : i32
    %c0_9 = arith.constant 0 : index
    %8 = arith.index_cast %c0_i32 : i32 to index
    %c0_10 = arith.constant 0 : index
    %c0_11 = arith.constant 0 : index
    %9 = vector.load %arg1[%c0_9, %8, %c0_10, %c0_11] : memref<1x8x2x16xf32, #tpu.memory_space<vmem>>, vector<1x1x2x16xf32>
    %10 = vector.shape_cast %9 : vector<1x1x2x16xf32> to vector<2x16xf32>
    %11 = tpu.concatenate %10, %6 in 1 : vector<2x16xf32>, vector<2x32xf32> -> vector<2x48xf32>
    %cst_12 = arith.constant dense<0.000000e+00> : vector<2x128xf32>
    %12 = tpu.matmul %11, %3, %cst_12 {dimension_numbers = #tpu.dot_dimension_numbers<[1], [0], [0], [1], [0, 0, 1, 1], [], []>} : vector<2x48xf32>, vector<48x128xf32>, vector<2x128xf32> -> vector<2x128xf32>
    %13 = arith.addf %12, %5 : vector<2x128xf32>
    %14 = vector.extract_strided_slice %13 {offsets = [0, 0], sizes = [2, 32], strides = [1, 1]} : vector<2x128xf32> to vector<2x32xf32>
    %15 = arith.negf %14 : vector<2x32xf32>
    %16 = math.exp %15 : vector<2x32xf32>
    %cst_13 = arith.constant 1.000000e+00 : f32
    %17 = vector.broadcast %cst_13 : f32 to vector<2x32xf32>
    %18 = arith.addf %17, %16 : vector<2x32xf32>
    %19 = arith.divf %17, %18 : vector<2x32xf32>
    %20 = vector.extract_strided_slice %13 {offsets = [0, 32], sizes = [2, 32], strides = [1, 1]} : vector<2x128xf32> to vector<2x32xf32>
    %21 = arith.negf %20 : vector<2x32xf32>
    %22 = math.exp %21 : vector<2x32xf32>
    %cst_14 = arith.constant 1.000000e+00 : f32
    %23 = vector.broadcast %cst_14 : f32 to vector<2x32xf32>
    %24 = arith.addf %23, %22 : vector<2x32xf32>
    %25 = arith.divf %23, %24 : vector<2x32xf32>
    %26 = vector.extract_strided_slice %13 {offsets = [0, 64], sizes = [2, 32], strides = [1, 1]} : vector<2x128xf32> to vector<2x32xf32>
    %27 = math.tanh %26 : vector<2x32xf32>
    %28 = vector.extract_strided_slice %13 {offsets = [0, 96], sizes = [2, 32], strides = [1, 1]} : vector<2x128xf32> to vector<2x32xf32>
    %29 = arith.negf %28 : vector<2x32xf32>
    %30 = math.exp %29 : vector<2x32xf32>
    %cst_15 = arith.constant 1.000000e+00 : f32
    %31 = vector.broadcast %cst_15 : f32 to vector<2x32xf32>
    %32 = arith.addf %31, %30 : vector<2x32xf32>
    %33 = arith.divf %31, %32 : vector<2x32xf32>
    %34 = arith.mulf %25, %7 : vector<2x32xf32>
    %35 = arith.mulf %19, %27 : vector<2x32xf32>
    %36 = arith.addf %34, %35 : vector<2x32xf32>
    %37 = math.tanh %36 : vector<2x32xf32>
    %38 = arith.mulf %33, %37 : vector<2x32xf32>
    %39 = vector.broadcast %c0_i32 : i32 to vector<2x1xi32>
    %40 = arith.cmpi sgt, %1, %39 : vector<2x1xi32>
    %41 = vector.shape_cast %40 : vector<2x1xi1> to vector<2x1xi1>
    %42 = vector.broadcast %41 : vector<2x1xi1> to vector<2x32xi1>
    %43 = arith.select %42, %38, %6 : vector<2x32xi1>, vector<2x32xf32>
    %44 = vector.shape_cast %40 : vector<2x1xi1> to vector<2x1xi1>
    %45 = vector.broadcast %44 : vector<2x1xi1> to vector<2x32xi1>
    %46 = arith.select %45, %36, %7 : vector<2x32xi1>, vector<2x32xf32>
    %c1_i32 = arith.constant 1 : i32
    %c0_16 = arith.constant 0 : index
    %47 = arith.index_cast %c1_i32 : i32 to index
    %c0_17 = arith.constant 0 : index
    %c0_18 = arith.constant 0 : index
    %48 = vector.load %arg1[%c0_16, %47, %c0_17, %c0_18] : memref<1x8x2x16xf32, #tpu.memory_space<vmem>>, vector<1x1x2x16xf32>
    %49 = vector.shape_cast %48 : vector<1x1x2x16xf32> to vector<2x16xf32>
    %50 = tpu.concatenate %49, %43 in 1 : vector<2x16xf32>, vector<2x32xf32> -> vector<2x48xf32>
    %cst_19 = arith.constant dense<0.000000e+00> : vector<2x128xf32>
    %51 = tpu.matmul %50, %3, %cst_19 {dimension_numbers = #tpu.dot_dimension_numbers<[1], [0], [0], [1], [0, 0, 1, 1], [], []>} : vector<2x48xf32>, vector<48x128xf32>, vector<2x128xf32> -> vector<2x128xf32>
    %52 = arith.addf %51, %5 : vector<2x128xf32>
    %53 = vector.extract_strided_slice %52 {offsets = [0, 0], sizes = [2, 32], strides = [1, 1]} : vector<2x128xf32> to vector<2x32xf32>
    %54 = arith.negf %53 : vector<2x32xf32>
    %55 = math.exp %54 : vector<2x32xf32>
    %cst_20 = arith.constant 1.000000e+00 : f32
    %56 = vector.broadcast %cst_20 : f32 to vector<2x32xf32>
    %57 = arith.addf %56, %55 : vector<2x32xf32>
    %58 = arith.divf %56, %57 : vector<2x32xf32>
    %59 = vector.extract_strided_slice %52 {offsets = [0, 32], sizes = [2, 32], strides = [1, 1]} : vector<2x128xf32> to vector<2x32xf32>
    %60 = arith.negf %59 : vector<2x32xf32>
    %61 = math.exp %60 : vector<2x32xf32>
    %cst_21 = arith.constant 1.000000e+00 : f32
    %62 = vector.broadcast %cst_21 : f32 to vector<2x32xf32>
    %63 = arith.addf %62, %61 : vector<2x32xf32>
    %64 = arith.divf %62, %63 : vector<2x32xf32>
    %65 = vector.extract_strided_slice %52 {offsets = [0, 64], sizes = [2, 32], strides = [1, 1]} : vector<2x128xf32> to vector<2x32xf32>
    %66 = math.tanh %65 : vector<2x32xf32>
    %67 = vector.extract_strided_slice %52 {offsets = [0, 96], sizes = [2, 32], strides = [1, 1]} : vector<2x128xf32> to vector<2x32xf32>
    %68 = arith.negf %67 : vector<2x32xf32>
    %69 = math.exp %68 : vector<2x32xf32>
    %cst_22 = arith.constant 1.000000e+00 : f32
    %70 = vector.broadcast %cst_22 : f32 to vector<2x32xf32>
    %71 = arith.addf %70, %69 : vector<2x32xf32>
    %72 = arith.divf %70, %71 : vector<2x32xf32>
    %73 = arith.mulf %64, %46 : vector<2x32xf32>
    %74 = arith.mulf %58, %66 : vector<2x32xf32>
    %75 = arith.addf %73, %74 : vector<2x32xf32>
    %76 = math.tanh %75 : vector<2x32xf32>
    %77 = arith.mulf %72, %76 : vector<2x32xf32>
    %78 = vector.broadcast %c1_i32 : i32 to vector<2x1xi32>
    %79 = arith.cmpi sgt, %1, %78 : vector<2x1xi32>
    %80 = vector.shape_cast %79 : vector<2x1xi1> to vector<2x1xi1>
    %81 = vector.broadcast %80 : vector<2x1xi1> to vector<2x32xi1>
    %82 = arith.select %81, %77, %43 : vector<2x32xi1>, vector<2x32xf32>
    %83 = vector.shape_cast %79 : vector<2x1xi1> to vector<2x1xi1>
    %84 = vector.broadcast %83 : vector<2x1xi1> to vector<2x32xi1>
    %85 = arith.select %84, %75, %46 : vector<2x32xi1>, vector<2x32xf32>
    %c2_i32 = arith.constant 2 : i32
    %c0_23 = arith.constant 0 : index
    %86 = arith.index_cast %c2_i32 : i32 to index
    %c0_24 = arith.constant 0 : index
    %c0_25 = arith.constant 0 : index
    %87 = vector.load %arg1[%c0_23, %86, %c0_24, %c0_25] : memref<1x8x2x16xf32, #tpu.memory_space<vmem>>, vector<1x1x2x16xf32>
    %88 = vector.shape_cast %87 : vector<1x1x2x16xf32> to vector<2x16xf32>
    %89 = tpu.concatenate %88, %82 in 1 : vector<2x16xf32>, vector<2x32xf32> -> vector<2x48xf32>
    %cst_26 = arith.constant dense<0.000000e+00> : vector<2x128xf32>
    %90 = tpu.matmul %89, %3, %cst_26 {dimension_numbers = #tpu.dot_dimension_numbers<[1], [0], [0], [1], [0, 0, 1, 1], [], []>} : vector<2x48xf32>, vector<48x128xf32>, vector<2x128xf32> -> vector<2x128xf32>
    %91 = arith.addf %90, %5 : vector<2x128xf32>
    %92 = vector.extract_strided_slice %91 {offsets = [0, 0], sizes = [2, 32], strides = [1, 1]} : vector<2x128xf32> to vector<2x32xf32>
    %93 = arith.negf %92 : vector<2x32xf32>
    %94 = math.exp %93 : vector<2x32xf32>
    %cst_27 = arith.constant 1.000000e+00 : f32
    %95 = vector.broadcast %cst_27 : f32 to vector<2x32xf32>
    %96 = arith.addf %95, %94 : vector<2x32xf32>
    %97 = arith.divf %95, %96 : vector<2x32xf32>
    %98 = vector.extract_strided_slice %91 {offsets = [0, 32], sizes = [2, 32], strides = [1, 1]} : vector<2x128xf32> to vector<2x32xf32>
    %99 = arith.negf %98 : vector<2x32xf32>
    %100 = math.exp %99 : vector<2x32xf32>
    %cst_28 = arith.constant 1.000000e+00 : f32
    %101 = vector.broadcast %cst_28 : f32 to vector<2x32xf32>
    %102 = arith.addf %101, %100 : vector<2x32xf32>
    %103 = arith.divf %101, %102 : vector<2x32xf32>
    %104 = vector.extract_strided_slice %91 {offsets = [0, 64], sizes = [2, 32], strides = [1, 1]} : vector<2x128xf32> to vector<2x32xf32>
    %105 = math.tanh %104 : vector<2x32xf32>
    %106 = vector.extract_strided_slice %91 {offsets = [0, 96], sizes = [2, 32], strides = [1, 1]} : vector<2x128xf32> to vector<2x32xf32>
    %107 = arith.negf %106 : vector<2x32xf32>
    %108 = math.exp %107 : vector<2x32xf32>
    %cst_29 = arith.constant 1.000000e+00 : f32
    %109 = vector.broadcast %cst_29 : f32 to vector<2x32xf32>
    %110 = arith.addf %109, %108 : vector<2x32xf32>
    %111 = arith.divf %109, %110 : vector<2x32xf32>
    %112 = arith.mulf %103, %85 : vector<2x32xf32>
    %113 = arith.mulf %97, %105 : vector<2x32xf32>
    %114 = arith.addf %112, %113 : vector<2x32xf32>
    %115 = math.tanh %114 : vector<2x32xf32>
    %116 = arith.mulf %111, %115 : vector<2x32xf32>
    %117 = vector.broadcast %c2_i32 : i32 to vector<2x1xi32>
    %118 = arith.cmpi sgt, %1, %117 : vector<2x1xi32>
    %119 = vector.shape_cast %118 : vector<2x1xi1> to vector<2x1xi1>
    %120 = vector.broadcast %119 : vector<2x1xi1> to vector<2x32xi1>
    %121 = arith.select %120, %116, %82 : vector<2x32xi1>, vector<2x32xf32>
    %122 = vector.shape_cast %118 : vector<2x1xi1> to vector<2x1xi1>
    %123 = vector.broadcast %122 : vector<2x1xi1> to vector<2x32xi1>
    %124 = arith.select %123, %114, %85 : vector<2x32xi1>, vector<2x32xf32>
    %c3_i32 = arith.constant 3 : i32
    %c0_30 = arith.constant 0 : index
    %125 = arith.index_cast %c3_i32 : i32 to index
    %c0_31 = arith.constant 0 : index
    %c0_32 = arith.constant 0 : index
    %126 = vector.load %arg1[%c0_30, %125, %c0_31, %c0_32] : memref<1x8x2x16xf32, #tpu.memory_space<vmem>>, vector<1x1x2x16xf32>
    %127 = vector.shape_cast %126 : vector<1x1x2x16xf32> to vector<2x16xf32>
    %128 = tpu.concatenate %127, %121 in 1 : vector<2x16xf32>, vector<2x32xf32> -> vector<2x48xf32>
    %cst_33 = arith.constant dense<0.000000e+00> : vector<2x128xf32>
    %129 = tpu.matmul %128, %3, %cst_33 {dimension_numbers = #tpu.dot_dimension_numbers<[1], [0], [0], [1], [0, 0, 1, 1], [], []>} : vector<2x48xf32>, vector<48x128xf32>, vector<2x128xf32> -> vector<2x128xf32>
    %130 = arith.addf %129, %5 : vector<2x128xf32>
    %131 = vector.extract_strided_slice %130 {offsets = [0, 0], sizes = [2, 32], strides = [1, 1]} : vector<2x128xf32> to vector<2x32xf32>
    %132 = arith.negf %131 : vector<2x32xf32>
    %133 = math.exp %132 : vector<2x32xf32>
    %cst_34 = arith.constant 1.000000e+00 : f32
    %134 = vector.broadcast %cst_34 : f32 to vector<2x32xf32>
    %135 = arith.addf %134, %133 : vector<2x32xf32>
    %136 = arith.divf %134, %135 : vector<2x32xf32>
    %137 = vector.extract_strided_slice %130 {offsets = [0, 32], sizes = [2, 32], strides = [1, 1]} : vector<2x128xf32> to vector<2x32xf32>
    %138 = arith.negf %137 : vector<2x32xf32>
    %139 = math.exp %138 : vector<2x32xf32>
    %cst_35 = arith.constant 1.000000e+00 : f32
    %140 = vector.broadcast %cst_35 : f32 to vector<2x32xf32>
    %141 = arith.addf %140, %139 : vector<2x32xf32>
    %142 = arith.divf %140, %141 : vector<2x32xf32>
    %143 = vector.extract_strided_slice %130 {offsets = [0, 64], sizes = [2, 32], strides = [1, 1]} : vector<2x128xf32> to vector<2x32xf32>
    %144 = math.tanh %143 : vector<2x32xf32>
    %145 = vector.extract_strided_slice %130 {offsets = [0, 96], sizes = [2, 32], strides = [1, 1]} : vector<2x128xf32> to vector<2x32xf32>
    %146 = arith.negf %145 : vector<2x32xf32>
    %147 = math.exp %146 : vector<2x32xf32>
    %cst_36 = arith.constant 1.000000e+00 : f32
    %148 = vector.broadcast %cst_36 : f32 to vector<2x32xf32>
    %149 = arith.addf %148, %147 : vector<2x32xf32>
    %150 = arith.divf %148, %149 : vector<2x32xf32>
    %151 = arith.mulf %142, %124 : vector<2x32xf32>
    %152 = arith.mulf %136, %144 : vector<2x32xf32>
    %153 = arith.addf %151, %152 : vector<2x32xf32>
    %154 = math.tanh %153 : vector<2x32xf32>
    %155 = arith.mulf %150, %154 : vector<2x32xf32>
    %156 = vector.broadcast %c3_i32 : i32 to vector<2x1xi32>
    %157 = arith.cmpi sgt, %1, %156 : vector<2x1xi32>
    %158 = vector.shape_cast %157 : vector<2x1xi1> to vector<2x1xi1>
    %159 = vector.broadcast %158 : vector<2x1xi1> to vector<2x32xi1>
    %160 = arith.select %159, %155, %121 : vector<2x32xi1>, vector<2x32xf32>
    %161 = vector.shape_cast %157 : vector<2x1xi1> to vector<2x1xi1>
    %162 = vector.broadcast %161 : vector<2x1xi1> to vector<2x32xi1>
    %163 = arith.select %162, %153, %124 : vector<2x32xi1>, vector<2x32xf32>
    %c4_i32 = arith.constant 4 : i32
    %c0_37 = arith.constant 0 : index
    %164 = arith.index_cast %c4_i32 : i32 to index
    %c0_38 = arith.constant 0 : index
    %c0_39 = arith.constant 0 : index
    %165 = vector.load %arg1[%c0_37, %164, %c0_38, %c0_39] : memref<1x8x2x16xf32, #tpu.memory_space<vmem>>, vector<1x1x2x16xf32>
    %166 = vector.shape_cast %165 : vector<1x1x2x16xf32> to vector<2x16xf32>
    %167 = tpu.concatenate %166, %160 in 1 : vector<2x16xf32>, vector<2x32xf32> -> vector<2x48xf32>
    %cst_40 = arith.constant dense<0.000000e+00> : vector<2x128xf32>
    %168 = tpu.matmul %167, %3, %cst_40 {dimension_numbers = #tpu.dot_dimension_numbers<[1], [0], [0], [1], [0, 0, 1, 1], [], []>} : vector<2x48xf32>, vector<48x128xf32>, vector<2x128xf32> -> vector<2x128xf32>
    %169 = arith.addf %168, %5 : vector<2x128xf32>
    %170 = vector.extract_strided_slice %169 {offsets = [0, 0], sizes = [2, 32], strides = [1, 1]} : vector<2x128xf32> to vector<2x32xf32>
    %171 = arith.negf %170 : vector<2x32xf32>
    %172 = math.exp %171 : vector<2x32xf32>
    %cst_41 = arith.constant 1.000000e+00 : f32
    %173 = vector.broadcast %cst_41 : f32 to vector<2x32xf32>
    %174 = arith.addf %173, %172 : vector<2x32xf32>
    %175 = arith.divf %173, %174 : vector<2x32xf32>
    %176 = vector.extract_strided_slice %169 {offsets = [0, 32], sizes = [2, 32], strides = [1, 1]} : vector<2x128xf32> to vector<2x32xf32>
    %177 = arith.negf %176 : vector<2x32xf32>
    %178 = math.exp %177 : vector<2x32xf32>
    %cst_42 = arith.constant 1.000000e+00 : f32
    %179 = vector.broadcast %cst_42 : f32 to vector<2x32xf32>
    %180 = arith.addf %179, %178 : vector<2x32xf32>
    %181 = arith.divf %179, %180 : vector<2x32xf32>
    %182 = vector.extract_strided_slice %169 {offsets = [0, 64], sizes = [2, 32], strides = [1, 1]} : vector<2x128xf32> to vector<2x32xf32>
    %183 = math.tanh %182 : vector<2x32xf32>
    %184 = vector.extract_strided_slice %169 {offsets = [0, 96], sizes = [2, 32], strides = [1, 1]} : vector<2x128xf32> to vector<2x32xf32>
    %185 = arith.negf %184 : vector<2x32xf32>
    %186 = math.exp %185 : vector<2x32xf32>
    %cst_43 = arith.constant 1.000000e+00 : f32
    %187 = vector.broadcast %cst_43 : f32 to vector<2x32xf32>
    %188 = arith.addf %187, %186 : vector<2x32xf32>
    %189 = arith.divf %187, %188 : vector<2x32xf32>
    %190 = arith.mulf %181, %163 : vector<2x32xf32>
    %191 = arith.mulf %175, %183 : vector<2x32xf32>
    %192 = arith.addf %190, %191 : vector<2x32xf32>
    %193 = math.tanh %192 : vector<2x32xf32>
    %194 = arith.mulf %189, %193 : vector<2x32xf32>
    %195 = vector.broadcast %c4_i32 : i32 to vector<2x1xi32>
    %196 = arith.cmpi sgt, %1, %195 : vector<2x1xi32>
    %197 = vector.shape_cast %196 : vector<2x1xi1> to vector<2x1xi1>
    %198 = vector.broadcast %197 : vector<2x1xi1> to vector<2x32xi1>
    %199 = arith.select %198, %194, %160 : vector<2x32xi1>, vector<2x32xf32>
    %200 = vector.shape_cast %196 : vector<2x1xi1> to vector<2x1xi1>
    %201 = vector.broadcast %200 : vector<2x1xi1> to vector<2x32xi1>
    %202 = arith.select %201, %192, %163 : vector<2x32xi1>, vector<2x32xf32>
    %c5_i32 = arith.constant 5 : i32
    %c0_44 = arith.constant 0 : index
    %203 = arith.index_cast %c5_i32 : i32 to index
    %c0_45 = arith.constant 0 : index
    %c0_46 = arith.constant 0 : index
    %204 = vector.load %arg1[%c0_44, %203, %c0_45, %c0_46] : memref<1x8x2x16xf32, #tpu.memory_space<vmem>>, vector<1x1x2x16xf32>
    %205 = vector.shape_cast %204 : vector<1x1x2x16xf32> to vector<2x16xf32>
    %206 = tpu.concatenate %205, %199 in 1 : vector<2x16xf32>, vector<2x32xf32> -> vector<2x48xf32>
    %cst_47 = arith.constant dense<0.000000e+00> : vector<2x128xf32>
    %207 = tpu.matmul %206, %3, %cst_47 {dimension_numbers = #tpu.dot_dimension_numbers<[1], [0], [0], [1], [0, 0, 1, 1], [], []>} : vector<2x48xf32>, vector<48x128xf32>, vector<2x128xf32> -> vector<2x128xf32>
    %208 = arith.addf %207, %5 : vector<2x128xf32>
    %209 = vector.extract_strided_slice %208 {offsets = [0, 0], sizes = [2, 32], strides = [1, 1]} : vector<2x128xf32> to vector<2x32xf32>
    %210 = arith.negf %209 : vector<2x32xf32>
    %211 = math.exp %210 : vector<2x32xf32>
    %cst_48 = arith.constant 1.000000e+00 : f32
    %212 = vector.broadcast %cst_48 : f32 to vector<2x32xf32>
    %213 = arith.addf %212, %211 : vector<2x32xf32>
    %214 = arith.divf %212, %213 : vector<2x32xf32>
    %215 = vector.extract_strided_slice %208 {offsets = [0, 32], sizes = [2, 32], strides = [1, 1]} : vector<2x128xf32> to vector<2x32xf32>
    %216 = arith.negf %215 : vector<2x32xf32>
    %217 = math.exp %216 : vector<2x32xf32>
    %cst_49 = arith.constant 1.000000e+00 : f32
    %218 = vector.broadcast %cst_49 : f32 to vector<2x32xf32>
    %219 = arith.addf %218, %217 : vector<2x32xf32>
    %220 = arith.divf %218, %219 : vector<2x32xf32>
    %221 = vector.extract_strided_slice %208 {offsets = [0, 64], sizes = [2, 32], strides = [1, 1]} : vector<2x128xf32> to vector<2x32xf32>
    %222 = math.tanh %221 : vector<2x32xf32>
    %223 = vector.extract_strided_slice %208 {offsets = [0, 96], sizes = [2, 32], strides = [1, 1]} : vector<2x128xf32> to vector<2x32xf32>
    %224 = arith.negf %223 : vector<2x32xf32>
    %225 = math.exp %224 : vector<2x32xf32>
    %cst_50 = arith.constant 1.000000e+00 : f32
    %226 = vector.broadcast %cst_50 : f32 to vector<2x32xf32>
    %227 = arith.addf %226, %225 : vector<2x32xf32>
    %228 = arith.divf %226, %227 : vector<2x32xf32>
    %229 = arith.mulf %220, %202 : vector<2x32xf32>
    %230 = arith.mulf %214, %222 : vector<2x32xf32>
    %231 = arith.addf %229, %230 : vector<2x32xf32>
    %232 = math.tanh %231 : vector<2x32xf32>
    %233 = arith.mulf %228, %232 : vector<2x32xf32>
    %234 = vector.broadcast %c5_i32 : i32 to vector<2x1xi32>
    %235 = arith.cmpi sgt, %1, %234 : vector<2x1xi32>
    %236 = vector.shape_cast %235 : vector<2x1xi1> to vector<2x1xi1>
    %237 = vector.broadcast %236 : vector<2x1xi1> to vector<2x32xi1>
    %238 = arith.select %237, %233, %199 : vector<2x32xi1>, vector<2x32xf32>
    %239 = vector.shape_cast %235 : vector<2x1xi1> to vector<2x1xi1>
    %240 = vector.broadcast %239 : vector<2x1xi1> to vector<2x32xi1>
    %241 = arith.select %240, %231, %202 : vector<2x32xi1>, vector<2x32xf32>
    %c6_i32 = arith.constant 6 : i32
    %c0_51 = arith.constant 0 : index
    %242 = arith.index_cast %c6_i32 : i32 to index
    %c0_52 = arith.constant 0 : index
    %c0_53 = arith.constant 0 : index
    %243 = vector.load %arg1[%c0_51, %242, %c0_52, %c0_53] : memref<1x8x2x16xf32, #tpu.memory_space<vmem>>, vector<1x1x2x16xf32>
    %244 = vector.shape_cast %243 : vector<1x1x2x16xf32> to vector<2x16xf32>
    %245 = tpu.concatenate %244, %238 in 1 : vector<2x16xf32>, vector<2x32xf32> -> vector<2x48xf32>
    %cst_54 = arith.constant dense<0.000000e+00> : vector<2x128xf32>
    %246 = tpu.matmul %245, %3, %cst_54 {dimension_numbers = #tpu.dot_dimension_numbers<[1], [0], [0], [1], [0, 0, 1, 1], [], []>} : vector<2x48xf32>, vector<48x128xf32>, vector<2x128xf32> -> vector<2x128xf32>
    %247 = arith.addf %246, %5 : vector<2x128xf32>
    %248 = vector.extract_strided_slice %247 {offsets = [0, 0], sizes = [2, 32], strides = [1, 1]} : vector<2x128xf32> to vector<2x32xf32>
    %249 = arith.negf %248 : vector<2x32xf32>
    %250 = math.exp %249 : vector<2x32xf32>
    %cst_55 = arith.constant 1.000000e+00 : f32
    %251 = vector.broadcast %cst_55 : f32 to vector<2x32xf32>
    %252 = arith.addf %251, %250 : vector<2x32xf32>
    %253 = arith.divf %251, %252 : vector<2x32xf32>
    %254 = vector.extract_strided_slice %247 {offsets = [0, 32], sizes = [2, 32], strides = [1, 1]} : vector<2x128xf32> to vector<2x32xf32>
    %255 = arith.negf %254 : vector<2x32xf32>
    %256 = math.exp %255 : vector<2x32xf32>
    %cst_56 = arith.constant 1.000000e+00 : f32
    %257 = vector.broadcast %cst_56 : f32 to vector<2x32xf32>
    %258 = arith.addf %257, %256 : vector<2x32xf32>
    %259 = arith.divf %257, %258 : vector<2x32xf32>
    %260 = vector.extract_strided_slice %247 {offsets = [0, 64], sizes = [2, 32], strides = [1, 1]} : vector<2x128xf32> to vector<2x32xf32>
    %261 = math.tanh %260 : vector<2x32xf32>
    %262 = vector.extract_strided_slice %247 {offsets = [0, 96], sizes = [2, 32], strides = [1, 1]} : vector<2x128xf32> to vector<2x32xf32>
    %263 = arith.negf %262 : vector<2x32xf32>
    %264 = math.exp %263 : vector<2x32xf32>
    %cst_57 = arith.constant 1.000000e+00 : f32
    %265 = vector.broadcast %cst_57 : f32 to vector<2x32xf32>
    %266 = arith.addf %265, %264 : vector<2x32xf32>
    %267 = arith.divf %265, %266 : vector<2x32xf32>
    %268 = arith.mulf %259, %241 : vector<2x32xf32>
    %269 = arith.mulf %253, %261 : vector<2x32xf32>
    %270 = arith.addf %268, %269 : vector<2x32xf32>
    %271 = math.tanh %270 : vector<2x32xf32>
    %272 = arith.mulf %267, %271 : vector<2x32xf32>
    %273 = vector.broadcast %c6_i32 : i32 to vector<2x1xi32>
    %274 = arith.cmpi sgt, %1, %273 : vector<2x1xi32>
    %275 = vector.shape_cast %274 : vector<2x1xi1> to vector<2x1xi1>
    %276 = vector.broadcast %275 : vector<2x1xi1> to vector<2x32xi1>
    %277 = arith.select %276, %272, %238 : vector<2x32xi1>, vector<2x32xf32>
    %278 = vector.shape_cast %274 : vector<2x1xi1> to vector<2x1xi1>
    %279 = vector.broadcast %278 : vector<2x1xi1> to vector<2x32xi1>
    %280 = arith.select %279, %270, %241 : vector<2x32xi1>, vector<2x32xf32>
    %c7_i32 = arith.constant 7 : i32
    %c0_58 = arith.constant 0 : index
    %281 = arith.index_cast %c7_i32 : i32 to index
    %c0_59 = arith.constant 0 : index
    %c0_60 = arith.constant 0 : index
    %282 = vector.load %arg1[%c0_58, %281, %c0_59, %c0_60] : memref<1x8x2x16xf32, #tpu.memory_space<vmem>>, vector<1x1x2x16xf32>
    %283 = vector.shape_cast %282 : vector<1x1x2x16xf32> to vector<2x16xf32>
    %284 = tpu.concatenate %283, %277 in 1 : vector<2x16xf32>, vector<2x32xf32> -> vector<2x48xf32>
    %cst_61 = arith.constant dense<0.000000e+00> : vector<2x128xf32>
    %285 = tpu.matmul %284, %3, %cst_61 {dimension_numbers = #tpu.dot_dimension_numbers<[1], [0], [0], [1], [0, 0, 1, 1], [], []>} : vector<2x48xf32>, vector<48x128xf32>, vector<2x128xf32> -> vector<2x128xf32>
    %286 = arith.addf %285, %5 : vector<2x128xf32>
    %287 = vector.extract_strided_slice %286 {offsets = [0, 0], sizes = [2, 32], strides = [1, 1]} : vector<2x128xf32> to vector<2x32xf32>
    %288 = arith.negf %287 : vector<2x32xf32>
    %289 = math.exp %288 : vector<2x32xf32>
    %cst_62 = arith.constant 1.000000e+00 : f32
    %290 = vector.broadcast %cst_62 : f32 to vector<2x32xf32>
    %291 = arith.addf %290, %289 : vector<2x32xf32>
    %292 = arith.divf %290, %291 : vector<2x32xf32>
    %293 = vector.extract_strided_slice %286 {offsets = [0, 32], sizes = [2, 32], strides = [1, 1]} : vector<2x128xf32> to vector<2x32xf32>
    %294 = arith.negf %293 : vector<2x32xf32>
    %295 = math.exp %294 : vector<2x32xf32>
    %cst_63 = arith.constant 1.000000e+00 : f32
    %296 = vector.broadcast %cst_63 : f32 to vector<2x32xf32>
    %297 = arith.addf %296, %295 : vector<2x32xf32>
    %298 = arith.divf %296, %297 : vector<2x32xf32>
    %299 = vector.extract_strided_slice %286 {offsets = [0, 64], sizes = [2, 32], strides = [1, 1]} : vector<2x128xf32> to vector<2x32xf32>
    %300 = math.tanh %299 : vector<2x32xf32>
    %301 = vector.extract_strided_slice %286 {offsets = [0, 96], sizes = [2, 32], strides = [1, 1]} : vector<2x128xf32> to vector<2x32xf32>
    %302 = arith.negf %301 : vector<2x32xf32>
    %303 = math.exp %302 : vector<2x32xf32>
    %cst_64 = arith.constant 1.000000e+00 : f32
    %304 = vector.broadcast %cst_64 : f32 to vector<2x32xf32>
    %305 = arith.addf %304, %303 : vector<2x32xf32>
    %306 = arith.divf %304, %305 : vector<2x32xf32>
    %307 = arith.mulf %298, %280 : vector<2x32xf32>
    %308 = arith.mulf %292, %300 : vector<2x32xf32>
    %309 = arith.addf %307, %308 : vector<2x32xf32>
    %310 = math.tanh %309 : vector<2x32xf32>
    %311 = arith.mulf %306, %310 : vector<2x32xf32>
    %312 = vector.broadcast %c7_i32 : i32 to vector<2x1xi32>
    %313 = arith.cmpi sgt, %1, %312 : vector<2x1xi32>
    %314 = vector.shape_cast %313 : vector<2x1xi1> to vector<2x1xi1>
    %315 = vector.broadcast %314 : vector<2x1xi1> to vector<2x32xi1>
    %316 = arith.select %315, %311, %277 : vector<2x32xi1>, vector<2x32xf32>
    %317 = vector.shape_cast %313 : vector<2x1xi1> to vector<2x1xi1>
    %318 = vector.broadcast %317 : vector<2x1xi1> to vector<2x32xi1>
    %319 = arith.select %318, %309, %280 : vector<2x32xi1>, vector<2x32xf32>
    %c8_i32 = arith.constant 8 : i32
    %c0_65 = arith.constant 0 : index
    %c0_66 = arith.constant 0 : index
    %c0_67 = arith.constant 0 : index
    %320 = vector.load %arg5[%c0_65, %c0_66, %c0_67] : memref<1x32x3xf32, #tpu.memory_space<vmem>>, vector<1x32x3xf32>
    %321 = vector.shape_cast %320 : vector<1x32x3xf32> to vector<32x3xf32>
    %cst_68 = arith.constant dense<0.000000e+00> : vector<2x3xf32>
    %322 = tpu.matmul %316, %321, %cst_68 {dimension_numbers = #tpu.dot_dimension_numbers<[1], [0], [0], [1], [0, 0, 1, 1], [], []>} : vector<2x32xf32>, vector<32x3xf32>, vector<2x3xf32> -> vector<2x3xf32>
    %c0_69 = arith.constant 0 : index
    %c0_70 = arith.constant 0 : index
    %c0_71 = arith.constant 0 : index
    %323 = vector.load %arg6[%c0_69, %c0_70, %c0_71] : memref<1x1x3xf32, #tpu.memory_space<vmem>>, vector<1x1x3xf32>
    %324 = vector.shape_cast %323 : vector<1x1x3xf32> to vector<1x3xf32>
    %325 = vector.broadcast %324 : vector<1x3xf32> to vector<2x3xf32>
    %326 = arith.addf %322, %325 : vector<2x3xf32>
    %c0_72 = arith.constant 0 : index
    %c0_73 = arith.constant 0 : index
    %c0_74 = arith.constant 0 : index
    %327 = vector.load %arg7[%c0_72, %c0_73, %c0_74] : memref<1x2x3xf32, #tpu.memory_space<vmem>>, vector<1x2x3xf32>
    %328 = vector.shape_cast %327 : vector<1x2x3xf32> to vector<2x3xf32>
    %329 = vector.shape_cast %326 : vector<2x3xf32> to vector<1x2x3xf32>
    tpu.vector_store %arg7[%c0_72, %c0_73, %c0_74], %329 {strides = array<i32>} : memref<1x2x3xf32, #tpu.memory_space<vmem>>, vector<1x2x3xf32>,
    return
  }
  func.func @transform_0(%arg0: i32) -> (i32, i32, i32, i32) {
    %c0_i32 = arith.constant 0 : i32
    %c0_i32_0 = arith.constant 0 : i32
    %c0_i32_1 = arith.constant 0 : i32
    %c0_i32_2 = arith.constant 0 : i32
    return %arg0, %c0_i32, %c0_i32_0, %c0_i32_1 : i32, i32, i32, i32
  }
  func.func @transform_1(%arg0: i32) -> (i32, i32, i32) {
    %c0_i32 = arith.constant 0 : i32
    %c0_i32_0 = arith.constant 0 : i32
    %c0_i32_1 = arith.constant 0 : i32
    return %arg0, %c0_i32, %c0_i32_0 : i32, i32, i32
  }
  func.func @transform_2(%arg0: i32) -> (i32, i32, i32) {
    %c0_i32 = arith.constant 0 : i32
    %c0_i32_0 = arith.constant 0 : i32
    %c0_i32_1 = arith.constant 0 : i32
    return %arg0, %c0_i32, %c0_i32_0 : i32, i32, i32
  }
  func.func @transform_3(%arg0: i32) -> (i32, i32, i32) {
    %c0_i32 = arith.constant 0 : i32
    %c0_i32_0 = arith.constant 0 : i32
    %c0_i32_1 = arith.constant 0 : i32
    return %arg0, %c0_i32, %c0_i32_0 : i32, i32, i32
  }
  func.func @transform_4(%arg0: i32) -> (i32, i32, i32) {
    %c0_i32 = arith.constant 0 : i32
    %c0_i32_0 = arith.constant 0 : i32
    %c0_i32_1 = arith.constant 0 : i32
    return %arg0, %c0_i32, %c0_i32_0 : i32, i32, i32
  }
  func.func @transform_5(%arg0: i32) -> (i32, i32, i32) {
    %c0_i32 = arith.constant 0 : i32
    %c0_i32_0 = arith.constant 0 : i32
    %c0_i32_1 = arith.constant 0 : i32
    return %arg0, %c0_i32, %c0_i32_0 : i32, i32, i32
  }
  func.func @transform_6(%arg0: i32) -> (i32, i32, i32) {
    %c0_i32 = arith.constant 0 : i32
    %c0_i32_0 = arith.constant 0 : i32
    %c0_i32_1 = arith.constant 0 : i32
    return %arg0, %c0_i32, %c0_i32_0 : i32, i32, i32
  }
}

</mosaic_0001>

<llo_original>
// kernel: tpu_custom_call.1
$region0: #{tpu_custom_call.1}
  #allocation0 [shape = 'u32[]', space=smem, size = 0x4, offset = 0x4, fixed_abs, tag = 'smem constant byte address 0x4 - core index']
  #allocation1 [shape = 'u32[144,128]{1,0:T(1,128)}', space=vmem, size = 0x12000, scoped, tag = 'internal scratch']
  %s0 = inlined_call_operand.vmem [shape: f32[2,8,2,16], index: 0, kind: input, shape index: {}]
  %s1 = inlined_call_operand.vmem [shape: s32[2,2,1], index: 1, kind: input, shape index: {}]
  %s2 = inlined_call_operand.hbm [shape: f32[2,48,128], index: 2, kind: input, shape index: {}]
  %s3 = inlined_call_operand.vmem [shape: f32[2,2,128], index: 3, kind: input, shape index: {}]
  %s4 = inlined_call_operand.vmem [shape: f32[2,32,3], index: 4, kind: input, shape index: {}]
  %s5 = inlined_call_operand.vmem [shape: f32[2,1,3], index: 5, kind: input, shape index: {}]
  %s6 = inlined_call_operand.hbm [shape: f32[2,2,3], index: 6, kind: output, shape index: {}]
  %s7 = sld [smem:[#allocation0]]
  $region61: #{tpu_custom_call.1} parent=0
    _
  %s9 = ssub.s32 1, %s7
  %s10 = scalar_select 0, %s9, %s7
  $region1: #{tpu_custom_call.1} parent=0
    #allocation2 [shape = 'u8[49152]{0}', space=vmem, size = 0xc000, scoped, tag = 'input window, operand 2']
    #allocation3 [shape = 's32[2]{0}', space=sflag, size = 0x8, scoped, tag = 'scoped memory for tpu_custom_call.1']
    #allocation4 [shape = 's32[2]{0}', space=sflag, size = 0x8, scoped, tag = 'scoped memory for tpu_custom_call.1']
    #allocation5 [shape = 'u8[2048]{0}', space=vmem, size = 0x800, scoped, tag = 'output window, operand 0']
    %11 = vsyncpa [#allocation3], 0
    %s12 = scalar_lea.sflag [#allocation3], 1
    %13 = vsyncpa %s12, 0
    %14 = vsyncpa [#allocation4], 0
    %s15 = scalar_lea.sflag [#allocation4], 1
    %16 = vsyncpa %s15, 0
    loop: start=0, step=1, limit=4
    $region2: #{tpu_custom_call.1} parent=1 // loop_pre_header
      _
    $region3: #{tpu_custom_call.1} parent=1 // loop_header
      %s18 = sphi 0, %s22
      %p19 = scmp.ge.s32.totalorder %s18, 4
      %s28 = sphi 0, %s30
      %s31 = sphi 0, %s28
      %s32 = sphi 0, %s31
      %s48 = sphi 0, %s32
      %s54 = sphi 0, %s56
      %s57 = sphi 0, %s54
      %s58 = sphi 0, %s57
      %s74 = sphi 0, %s58
      %s80 = sphi 0, %s82
      %s83 = sphi 0, %s80
      %s84 = sphi 0, %s83
      %s100 = sphi 0, %s84
      %s106 = sphi 0, %s108
      %s109 = sphi 0, %s106
      %s110 = sphi 0, %s109
      %s126 = sphi 0, %s110
      %s132 = sphi 0, %s134
      %s135 = sphi 0, %s132
      %s136 = sphi 0, %s135
      %s152 = sphi 0, %s136
      %s158 = sphi 0, %s160
      %s161 = sphi 0, %s158
      %s162 = sphi 0, %s161
      %s178 = sphi 0, %s162
      %s184 = sphi 0, %s186
      %s187 = sphi 0, %s184
      %s188 = sphi 0, %s187
      %s204 = sphi 0, %s188
    $region4: #{tpu_custom_call.1} parent=1 // loop_header_branch
      %21 = sbr.rel (%p19) target = $region8
    $region5: #{tpu_custom_call.1} parent=1 // loop_body
      %s23 = ssub.s32 %s18, 1
      %s24 = ssub.s32 %s18, 2
      %s25 = sadd.s32 %s18, 1
      %s26 = ssub.s32 %s18, %s25
      %p27 = scmp.eq.s32.totalorder %s26, 0
      %s29 = sadd.s32 %s28, 1
      %s30 = scalar_select %p27, %s28, %s29
      %p33 = pneg %p27
      %p34 = scmp.eq.s32.totalorder %s18, 1
      %p35 = por %p33, %p34
      %p36 = scmp.ne.s32.totalorder %s28, %s31
      %p37 = scmp.eq.s32.totalorder %s18, 0
      %p38 = por %p36, %p37
      %p39 = scmp.ne.s32.totalorder %s28, %s31
      %p40 = scmp.eq.s32.totalorder %s23, 1
      %p41 = por %p39, %p40
      %p42 = scmp.ne.s32.totalorder %s31, %s32
      %p43 = scmp.eq.s32.totalorder %s23, 0
      %p44 = por %p42, %p43
      %p45 = scmp.ne.s32.totalorder %s31, %s32
      %p46 = scmp.eq.s32.totalorder %s24, 1
      %p47 = por %p45, %p46
      %p49 = scmp.ne.s32.totalorder %s32, %s48
      %p50 = scmp.eq.s32.totalorder %s24, 0
      %p51 = por %p49, %p50
      %s52 = ssub.s32 %s18, %s25
      %p53 = scmp.eq.s32.totalorder %s52, 0
      %s55 = sadd.s32 %s54, 1
      %s56 = scalar_select %p53, %s54, %s55
      %p59 = pneg %p53
      %p60 = scmp.eq.s32.totalorder %s18, 1
      %p61 = por %p59, %p60
      %p62 = scmp.ne.s32.totalorder %s54, %s57
      %p63 = scmp.eq.s32.totalorder %s18, 0
      %p64 = por %p62, %p63
      %p65 = scmp.ne.s32.totalorder %s54, %s57
      %p66 = scmp.eq.s32.totalorder %s23, 1
      %p67 = por %p65, %p66
      %p68 = scmp.ne.s32.totalorder %s57, %s58
      %p69 = scmp.eq.s32.totalorder %s23, 0
      %p70 = por %p68, %p69
      %p71 = scmp.ne.s32.totalorder %s57, %s58
      %p72 = scmp.eq.s32.totalorder %s24, 1
      %p73 = por %p71, %p72
      %p75 = scmp.ne.s32.totalorder %s58, %s74
      %p76 = scmp.eq.s32.totalorder %s24, 0
      %p77 = por %p75, %p76
      %s78 = ssub.s32 %s18, %s25
      %p79 = scmp.eq.s32.totalorder %s78, 0
      %s81 = sadd.s32 %s80, 1
      %s82 = scalar_select %p79, %s80, %s81
      %p85 = pneg %p79
      %p86 = scmp.eq.s32.totalorder %s18, 1
      %p87 = por %p85, %p86
      %p88 = scmp.ne.s32.totalorder %s80, %s83
      %p89 = scmp.eq.s32.totalorder %s18, 0
      %p90 = por %p88, %p89
      %p91 = scmp.ne.s32.totalorder %s80, %s83
      %p92 = scmp.eq.s32.totalorder %s23, 1
      %p93 = por %p91, %p92
      %p94 = scmp.ne.s32.totalorder %s83, %s84
      %p95 = scmp.eq.s32.totalorder %s23, 0
      %p96 = por %p94, %p95
      %p97 = scmp.ne.s32.totalorder %s83, %s84
      %p98 = scmp.eq.s32.totalorder %s24, 1
      %p99 = por %p97, %p98
      %p101 = scmp.ne.s32.totalorder %s84, %s100
      %p102 = scmp.eq.s32.totalorder %s24, 0
      %p103 = por %p101, %p102
      %s104 = ssub.s32 %s18, %s25
      %p105 = scmp.eq.s32.totalorder %s104, 0
      %s107 = sadd.s32 %s106, 1
      %s108 = scalar_select %p105, %s106, %s107
      %p111 = pneg %p105
      %p112 = scmp.eq.s32.totalorder %s18, 1
      %p113 = por %p111, %p112
      %p114 = scmp.ne.s32.totalorder %s106, %s109
      %p115 = scmp.eq.s32.totalorder %s18, 0
      %p116 = por %p114, %p115
      %p117 = scmp.ne.s32.totalorder %s106, %s109
      %p118 = scmp.eq.s32.totalorder %s23, 1
      %p119 = por %p117, %p118
      %p120 = scmp.ne.s32.totalorder %s109, %s110
      %p121 = scmp.eq.s32.totalorder %s23, 0
      %p122 = por %p120, %p121
      %p123 = scmp.ne.s32.totalorder %s109, %s110
      %p124 = scmp.eq.s32.totalorder %s24, 1
      %p125 = por %p123, %p124
      %p127 = scmp.ne.s32.totalorder %s110, %s126
      %p128 = scmp.eq.s32.totalorder %s24, 0
      %p129 = por %p127, %p128
      %s130 = ssub.s32 %s18, %s25
      %p131 = scmp.eq.s32.totalorder %s130, 0
      %s133 = sadd.s32 %s132, 1
      %s134 = scalar_select %p131, %s132, %s133
      %p137 = pneg %p131
      %p138 = scmp.eq.s32.totalorder %s18, 1
      %p139 = por %p137, %p138
      %p140 = scmp.ne.s32.totalorder %s132, %s135
      %p141 = scmp.eq.s32.totalorder %s18, 0
      %p142 = por %p140, %p141
      %p143 = scmp.ne.s32.totalorder %s132, %s135
      %p144 = scmp.eq.s32.totalorder %s23, 1
      %p145 = por %p143, %p144
      %p146 = scmp.ne.s32.totalorder %s135, %s136
      %p147 = scmp.eq.s32.totalorder %s23, 0
      %p148 = por %p146, %p147
      %p149 = scmp.ne.s32.totalorder %s135, %s136
      %p150 = scmp.eq.s32.totalorder %s24, 1
      %p151 = por %p149, %p150
      %p153 = scmp.ne.s32.totalorder %s136, %s152
      %p154 = scmp.eq.s32.totalorder %s24, 0
      %p155 = por %p153, %p154
      %s156 = ssub.s32 %s18, %s25
      %p157 = scmp.eq.s32.totalorder %s156, 0
      %s159 = sadd.s32 %s158, 1
      %s160 = scalar_select %p157, %s158, %s159
      %p163 = pneg %p157
      %p164 = scmp.eq.s32.totalorder %s18, 1
      %p165 = por %p163, %p164
      %p166 = scmp.ne.s32.totalorder %s158, %s161
      %p167 = scmp.eq.s32.totalorder %s18, 0
      %p168 = por %p166, %p167
      %p169 = scmp.ne.s32.totalorder %s158, %s161
      %p170 = scmp.eq.s32.totalorder %s23, 1
      %p171 = por %p169, %p170
      %p172 = scmp.ne.s32.totalorder %s161, %s162
      %p173 = scmp.eq.s32.totalorder %s23, 0
      %p174 = por %p172, %p173
      %p175 = scmp.ne.s32.totalorder %s161, %s162
      %p176 = scmp.eq.s32.totalorder %s24, 1
      %p177 = por %p175, %p176
      %p179 = scmp.ne.s32.totalorder %s162, %s178
      %p180 = scmp.eq.s32.totalorder %s24, 0
      %p181 = por %p179, %p180
      %s182 = ssub.s32 %s18, %s25
      %p183 = scmp.eq.s32.totalorder %s182, 0
      %s185 = sadd.s32 %s184, 1
      %s186 = scalar_select %p183, %s184, %s185
      %p189 = pneg %p183
      %p190 = scmp.eq.s32.totalorder %s18, 1
      %p191 = por %p189, %p190
      %p192 = scmp.ne.s32.totalorder %s184, %s187
      %p193 = scmp.eq.s32.totalorder %s18, 0
      %p194 = por %p192, %p193
      %p195 = scmp.ne.s32.totalorder %s184, %s187
      %p196 = scmp.eq.s32.totalorder %s23, 1
      %p197 = por %p195, %p196
      %p198 = scmp.ne.s32.totalorder %s187, %s188
      %p199 = scmp.eq.s32.totalorder %s23, 0
      %p200 = por %p198, %p199
      %p201 = scmp.ne.s32.totalorder %s187, %s188
      %p202 = scmp.eq.s32.totalorder %s24, 1
      %p203 = por %p201, %p202
      %p205 = scmp.ne.s32.totalorder %s188, %s204
      %p206 = scmp.eq.s32.totalorder %s24, 0
      %p207 = por %p205, %p206
      %p208 = scmp.le.s32.totalorder 1, %s18
      %p209 = scmp.lt.s32.totalorder %s18, 3
      %p210 = pnand %p208, %p209
      %p211 = pneg %p210
      // Predicated region
      $region9: #{tpu_custom_call.1} parent=5 // pred_check
        _
      $region10: #{tpu_custom_call.1} parent=5 // pred_check_branch
        %213 = sbr.rel (%p210) target = $region12
      $region11: #{tpu_custom_call.1} parent=5 // pred_region
        %s214 = ssub.s32 %s18, 1
      $region12: #{tpu_custom_call.1} parent=5 // pred_fallthru
        _
      %p215 = scmp.lt.s32.totalorder %s18, 2
      // Predicated region
      $region13: #{tpu_custom_call.1} parent=5 // pred_check
        %p216 = pneg %p215
      $region14: #{tpu_custom_call.1} parent=5 // pred_check_branch
        %218 = sbr.rel (%p216) target = $region16
      $region15: #{tpu_custom_call.1} parent=5 // pred_region
        // Predicated region
        $region17: #{tpu_custom_call.1} parent=15 // pred_check
          %p219 = pneg %p38
        $region18: #{tpu_custom_call.1} parent=15 // pred_check_branch
          %221 = sbr.rel (%p219) target = $region20
        $region19: #{tpu_custom_call.1} parent=15 // pred_region
          %p222 = scmp.lt.s32.totalorder %s18, 1
          %s223 = scalar_select %p222, %s18, 1
          %s224 = smul.addr %s223, 8
          %s225 = smul.addr %s224, 2
          %s226 = scalar_lea.vmem %s0, %s225
        $region20: #{tpu_custom_call.1} parent=15 // pred_fallthru
          _
        // Predicated region
        $region21: #{tpu_custom_call.1} parent=15 // pred_check
          %p227 = pneg %p64
        $region22: #{tpu_custom_call.1} parent=15 // pred_check_branch
          %229 = sbr.rel (%p227) target = $region24
        $region23: #{tpu_custom_call.1} parent=15 // pred_region
          %p230 = scmp.lt.s32.totalorder %s18, 1
          %s231 = scalar_select %p230, %s18, 1
          %s232 = smul.addr %s231, 2
          %s233 = scalar_lea.vmem %s1, %s232
        $region24: #{tpu_custom_call.1} parent=15 // pred_fallthru
          _
        // Predicated region
        $region25: #{tpu_custom_call.1} parent=15 // pred_check
          %p234 = pneg %p90
        $region26: #{tpu_custom_call.1} parent=15 // pred_check_branch
          %236 = sbr.rel (%p234) target = $region28
        $region27: #{tpu_custom_call.1} parent=15 // pred_region
          %s237 = sand.u32 %s80, 1
          %s238 = scalar_lea.sflag [#allocation3], %s237
          %s239 = sand.u32 %s80, 1
          %s240 = smul.addr %s239, 48
          %s241 = scalar_lea.vmem [#allocation2], %s240
          %s243 = ssub.s32 768, 768
          %244 = vsyncadd %s238, %s243
          %s245 = smul.addr %s18, 6
          %s246 = smul.addr %s245, 128
          %s247 = scalar_lea.hbm %s2, %s246
          %s248 = sshll.u32 %s241, 4
          %s249 = int_to_ptr.vmem [resolvable:$true] %s248
          %254 = dma.hbm_to_vmem [thread:$0]  %s247, 768, %s249, %s238, 128, 128, 8
        $region28: #{tpu_custom_call.1} parent=15 // pred_fallthru
          _
        // Predicated region
        $region29: #{tpu_custom_call.1} parent=15 // pred_check
          %p255 = pneg %p116
        $region30: #{tpu_custom_call.1} parent=15 // pred_check_branch
          %257 = sbr.rel (%p255) target = $region32
        $region31: #{tpu_custom_call.1} parent=15 // pred_region
          %p258 = scmp.lt.s32.totalorder %s18, 1
          %s259 = scalar_select %p258, %s18, 1
          %s260 = smul.addr %s259, 2
          %s261 = scalar_lea.vmem %s3, %s260
        $region32: #{tpu_custom_call.1} parent=15 // pred_fallthru
          _
        // Predicated region
        $region33: #{tpu_custom_call.1} parent=15 // pred_check
          %p262 = pneg %p142
        $region34: #{tpu_custom_call.1} parent=15 // pred_check_branch
          %264 = sbr.rel (%p262) target = $region36
        $region35: #{tpu_custom_call.1} parent=15 // pred_region
          %p265 = scmp.lt.s32.totalorder %s18, 1
          %s266 = scalar_select %p265, %s18, 1
          %s267 = smul.addr %s266, 4
          %s268 = smul.addr %s267, 8
          %s269 = scalar_lea.vmem %s4, %s268
        $region36: #{tpu_custom_call.1} parent=15 // pred_fallthru
          _
        // Predicated region
        $region37: #{tpu_custom_call.1} parent=15 // pred_check
          %p270 = pneg %p168
        $region38: #{tpu_custom_call.1} parent=15 // pred_check_branch
          %272 = sbr.rel (%p270) target = $region40
        $region39: #{tpu_custom_call.1} parent=15 // pred_region
          %p273 = scmp.lt.s32.totalorder %s18, 1
          %s274 = scalar_select %p273, %s18, 1
          %s275 = scalar_lea.vmem %s5, %s274
        $region40: #{tpu_custom_call.1} parent=15 // pred_fallthru
          _
      $region16: #{tpu_custom_call.1} parent=5 // pred_fallthru
        _
      %p276 = scmp.le.s32.totalorder 1, %s18
      %p277 = scmp.lt.s32.totalorder %s18, 3
      %p278 = pnand %p276, %p277
      %p279 = pneg %p278
      // Predicated region
      $region41: #{tpu_custom_call.1} parent=5 // pred_check
        _
      $region42: #{tpu_custom_call.1} parent=5 // pred_check_branch
        %281 = sbr.rel (%p278) target = $region44
      $region43: #{tpu_custom_call.1} parent=5 // pred_region
        %s282 = ssub.s32 %s18, 1
        %s283 = sand.u32 %s83, 1
        %s284 = scalar_lea.sflag [#allocation3], %s283
        %s285 = sand.u32 %s83, 1
        %s286 = smul.addr %s285, 48
        %s287 = scalar_lea.vmem [#allocation2], %s286
        // Predicated region
        $region45: #{tpu_custom_call.1} parent=43 // pred_check
          %p288 = pneg %p96
        $region46: #{tpu_custom_call.1} parent=43 // pred_check_branch
          %290 = sbr.rel (%p288) target = $region48
        $region47: #{tpu_custom_call.1} parent=43 // pred_region
          %291 = dma.done %s284, 768
        $region48: #{tpu_custom_call.1} parent=43 // pred_fallthru
          _
        %p292 = scmp.lt.s32.totalorder %s23, 1
        %s293 = scalar_select %p292, %s23, 1
        %s294 = smul.addr %s293, 8
        %s295 = smul.addr %s294, 2
        %s296 = scalar_lea.vmem %s0, %s295
        %p297 = pneg %p44
        %p298 = pneg %p41
        %p299 = scmp.lt.s32.totalorder %s23, 1
        %s300 = scalar_select %p299, %s23, 1
        %s301 = smul.addr %s300, 2
        %s302 = scalar_lea.vmem %s1, %s301
        %p303 = pneg %p70
        %p304 = pneg %p67
        %s305 = sand.u32 %s83, 1
        %s306 = scalar_lea.sflag [#allocation3], %s305
        %s307 = sand.u32 %s83, 1
        %s308 = smul.addr %s307, 48
        %s309 = scalar_lea.vmem [#allocation2], %s308
        %p310 = pneg %p96
        %p311 = pneg %p93
        %p312 = scmp.lt.s32.totalorder %s23, 1
        %s313 = scalar_select %p312, %s23, 1
        %s314 = smul.addr %s313, 2
        %s315 = scalar_lea.vmem %s3, %s314
        %p316 = pneg %p122
        %p317 = pneg %p119
        %p318 = scmp.lt.s32.totalorder %s23, 1
        %s319 = scalar_select %p318, %s23, 1
        %s320 = smul.addr %s319, 4
        %s321 = smul.addr %s320, 8
        %s322 = scalar_lea.vmem %s4, %s321
        %p323 = pneg %p148
        %p324 = pneg %p145
        %p325 = scmp.lt.s32.totalorder %s23, 1
        %s326 = scalar_select %p325, %s23, 1
        %s327 = scalar_lea.vmem %s5, %s326
        %p328 = pneg %p174
        %p329 = pneg %p171
        %p330 = pneg %p200
        %p331 = pneg %p197
        %s332 = sand.u32 %s187, 1
        %s333 = scalar_lea.sflag [#allocation4], %s332
        %s334 = sand.u32 %s187, 1
        %s335 = smul.addr %s334, 2
        %s336 = scalar_lea.vmem [#allocation5], %s335
        %p337 = scmp.lt.s32.totalorder %s23, 1
        %s338 = scalar_select %p337, %s23, 1
        %s339 = smul.addr %s338, 8
        %s340 = smul.addr %s339, 2
        %s341 = scalar_lea.vmem %s0, %s340
        %p342 = scmp.lt.s32.totalorder %s23, 1
        %s343 = scalar_select %p342, %s23, 1
        %s344 = smul.addr %s343, 2
        %s345 = scalar_lea.vmem %s1, %s344
        %p346 = scmp.lt.s32.totalorder %s23, 1
        %s347 = scalar_select %p346, %s23, 1
        %s348 = smul.addr %s347, 2
        %s349 = scalar_lea.vmem %s3, %s348
        %p350 = scmp.lt.s32.totalorder %s23, 1
        %s351 = scalar_select %p350, %s23, 1
        %s352 = smul.addr %s351, 4
        %s353 = smul.addr %s352, 8
        %s354 = scalar_lea.vmem %s4, %s353
        %p355 = scmp.lt.s32.totalorder %s23, 1
        %s356 = scalar_select %p355, %s23, 1
        %s357 = scalar_lea.vmem %s5, %s356
        %v358 = vld [vmem:[%s345] sm:$0x3]
        %v359 = vld [vmem:[%s287] sm:$0xff]
        %v360 = vld [vmem:[%s287 + $0x8] sm:$0xff]
        %v361 = vld [vmem:[%s287 + $0x10] sm:$0xff]
        %v362 = vld [vmem:[%s287 + $0x18] sm:$0xff]
        %v363 = vld [vmem:[%s287 + $0x20] sm:$0xff]
        %v364 = vld [vmem:[%s287 + $0x28] sm:$0xff]
        %v365 = vld [vmem:[%s349] sm:$0x3]
        %v366 = vld [vmem:[%s341] sm:$0x3]
        %vm367 = vcmask 130048
        %v368 = vsel %vm367, %v366, 0.0
        %vm369 = vcmask 392192
        %v371 = vsel %vm369, %v368, 0
        %373 = vmatprep.subr.mxu0 0.0
        %374 = vmatpush1.msra.mxu0 %v359
        %375 = vmatprep.subr.mxu0 0.0
        %376 = vmatpush1.msra.mxu0 %v360
        %377 = vmatprep.subr.mxu0 0.0
        %378 = vmatpush1.msra.mxu0 %v361
        %379 = vmatprep.subr.mxu0 0.0
        %380 = vmatpush1.msra.mxu0 %v362
        %381 = vmatprep.subr.mxu0 0.0
        %382 = vmatpush1.msra.mxu0 %v363
        %383 = vmatprep.subr.mxu0 0.0
        %384 = vmatpush1.msra.mxu0 %v364
        %385 = vmatprep.subr.mxu0 0.0
        %386 = vmatpush1.msra.mxu0 0.0
        %387 = vmatprep.subr.mxu0 0.0
        %388 = vmatpush1.msra.mxu0 0.0
        %389 = vmatprep.subr.mxu0 0.0
        %390 = vmatpush1.msra.mxu0 0.0
        %391 = vmatprep.subr.mxu0 0.0
        %392 = vmatpush1.msra.mxu0 0.0
        %393 = vmatprep.subr.mxu0 0.0
        %394 = vmatpush1.msra.mxu0 0.0
        %395 = vmatprep.subr.mxu0 0.0
        %396 = vmatpush1.msra.mxu0 0.0
        %397 = vmatprep.subr.mxu0 0.0
        %398 = vmatpush1.msra.mxu0 0.0
        %399 = vmatprep.subr.mxu0 0.0
        %400 = vmatpush1.msra.mxu0 0.0
        %401 = vmatprep.subr.mxu0 0.0
        %402 = vmatpush1.msra.mxu0 0.0
        %403 = vmatprep.subr.mxu0 0.0
        %404 = vmatpush1.msra.mxu0 0.0
        %405 = vmatprep.subr.mxu0 0.0
        %406 = vmatpush1.msra.mxu0 0.0
        %407 = vmatprep.subr.mxu0 0.0
        %408 = vmatpush1.msra.mxu0 0.0
        %409 = vmatprep.subr.mxu0 0.0
        %410 = vmatpush1.msra.mxu0 0.0
        %411 = vmatprep.subr.mxu0 0.0
        %412 = vmatpush1.msra.mxu0 0.0
        %413 = vmatprep.subr.mxu0 0.0
        %414 = vmatpush1.msra.mxu0 0.0
        %415 = vmatprep.subr.mxu0 0.0
        %416 = vmatpush1.msra.mxu0 0.0
        %417 = vmatprep.subr.mxu0 0.0
        %418 = vmatpush1.msra.mxu0 0.0
        %419 = vmatprep.subr.mxu0 0.0
        %420 = vmatpush1.msra.mxu0 0.0
        %421 = vmatprep.subr.mxu0 0.0
        %422 = vmatpush1.msra.mxu0 0.0
        %423 = vmatprep.subr.mxu0 0.0
        %424 = vmatpush1.msra.mxu0 0.0
        %425 = vmatprep.subr.mxu0 0.0
        %426 = vmatpush1.msra.mxu0 0.0
        %427 = vmatprep.subr.mxu0 0.0
        %428 = vmatpush1.msra.mxu0 0.0
        %429 = vmatprep.subr.mxu0 0.0
        %430 = vmatpush1.msra.mxu0 0.0
        %431 = vmatprep.subr.mxu0 0.0
        %432 = vmatpush1.msra.mxu0 0.0
        %433 = vmatprep.subr.mxu0 0.0
        %434 = vmatpush1.msra.mxu0 0.0
        %435 = vmatprep.subr.mxu0 0.0
        %436 = vmatpush1.msra.mxu0 0.0
        %437 = vmatprep.mubr.f32.mxu0 0.0
        %438 = vmatmul.mubr.f32.gmra.mrb[0].mxu0 %v371
        %v439 = vpop.f32.mrb[0].mxu0
        %v440 = vadd.f32 %v365, %v439
        %v441 = vpop.f32.mrb[0].mxu0
        %442 = vdwg.mxu0
        %v443 = vxor.u32 %v440, 2147483648
        %v444 = vmul.f32 %v443, 1.442695
        %v445 = vpow.pop %v444
        %v446 = vadd.f32 %v445, 1.0
        %v447 = vrcp.pop %v446
        %v448 = vmul.f32 1.0, %v447
        %v449 = vtanh.pop %v440
        %v450 = vmul.f32 %v448, 0.0
        %452 = vrot.lane.b32.xlu0 %v449, 64
        %v453 = vpop.permute.xlu0 %452
        %v455 = vmul.f32 %v448, %v453
        %457 = vrot.lane.b32.xlu0 %v455, 32
        %v458 = vpop.permute.xlu0 %457
        %v460 = vadd.f32 %v450, %v458
        %v461 = vtanh.pop %v460
        %463 = vrot.lane.b32.xlu0 %v461, 64
        %v464 = vpop.permute.xlu0 %463
        %v466 = vmul.f32 %v448, %v464
        %vm467 = vcmp.gt.s32.totalorder %v358, 0
        %v468 = vsel %vm467, 1, 0
        %469 = vset.pattern.permute.xlu0 0
        %470 = vperm.xlu0 %469, %v468
        %v471 = vpop.permute.xlu0 %470
        %vm472 = vcmp.eq.s32.totalorder %v471, 1
        %v473 = vsel %vm472, %v466, 0.0
        %v474 = vsel %vm472, %v460, 0.0
        %s475 = scalar_lea.vmem %s341, 2
        %v476 = vld [vmem:[%s475] sm:$0x3]
        %478 = vrot.lane.b32.xlu0 %v473, 48
        %v479 = vpop.permute.xlu0 %478
        %v481 = vsel %vm367, %v476, %v479
        %v483 = vsel %vm369, %v481, 0
        %485 = vmatprep.subr.mxu0 0.0
        %486 = vmatpush1.msra.mxu0 %v359
        %487 = vmatprep.subr.mxu0 0.0
        %488 = vmatpush1.msra.mxu0 %v360
        %489 = vmatprep.subr.mxu0 0.0
        %490 = vmatpush1.msra.mxu0 %v361
        %491 = vmatprep.subr.mxu0 0.0
        %492 = vmatpush1.msra.mxu0 %v362
        %493 = vmatprep.subr.mxu0 0.0
        %494 = vmatpush1.msra.mxu0 %v363
        %495 = vmatprep.subr.mxu0 0.0
        %496 = vmatpush1.msra.mxu0 %v364
        %497 = vmatprep.subr.mxu0 0.0
        %498 = vmatpush1.msra.mxu0 0.0
        %499 = vmatprep.subr.mxu0 0.0
        %500 = vmatpush1.msra.mxu0 0.0
        %501 = vmatprep.subr.mxu0 0.0
        %502 = vmatpush1.msra.mxu0 0.0
        %503 = vmatprep.subr.mxu0 0.0
        %504 = vmatpush1.msra.mxu0 0.0
        %505 = vmatprep.subr.mxu0 0.0
        %506 = vmatpush1.msra.mxu0 0.0
        %507 = vmatprep.subr.mxu0 0.0
        %508 = vmatpush1.msra.mxu0 0.0
        %509 = vmatprep.subr.mxu0 0.0
        %510 = vmatpush1.msra.mxu0 0.0
        %511 = vmatprep.subr.mxu0 0.0
        %512 = vmatpush1.msra.mxu0 0.0
        %513 = vmatprep.subr.mxu0 0.0
        %514 = vmatpush1.msra.mxu0 0.0
        %515 = vmatprep.subr.mxu0 0.0
        %516 = vmatpush1.msra.mxu0 0.0
        %517 = vmatprep.subr.mxu0 0.0
        %518 = vmatpush1.msra.mxu0 0.0
        %519 = vmatprep.subr.mxu0 0.0
        %520 = vmatpush1.msra.mxu0 0.0
        %521 = vmatprep.subr.mxu0 0.0
        %522 = vmatpush1.msra.mxu0 0.0
        %523 = vmatprep.subr.mxu0 0.0
        %524 = vmatpush1.msra.mxu0 0.0
        %525 = vmatprep.subr.mxu0 0.0
        %526 = vmatpush1.msra.mxu0 0.0
        %527 = vmatprep.subr.mxu0 0.0
        %528 = vmatpush1.msra.mxu0 0.0
        %529 = vmatprep.subr.mxu0 0.0
        %530 = vmatpush1.msra.mxu0 0.0
        %531 = vmatprep.subr.mxu0 0.0
        %532 = vmatpush1.msra.mxu0 0.0
        %533 = vmatprep.subr.mxu0 0.0
        %534 = vmatpush1.msra.mxu0 0.0
        %535 = vmatprep.subr.mxu0 0.0
        %536 = vmatpush1.msra.mxu0 0.0
        %537 = vmatprep.subr.mxu0 0.0
        %538 = vmatpush1.msra.mxu0 0.0
        %539 = vmatprep.subr.mxu0 0.0
        %540 = vmatpush1.msra.mxu0 0.0
        %541 = vmatprep.subr.mxu0 0.0
        %542 = vmatpush1.msra.mxu0 0.0
        %543 = vmatprep.subr.mxu0 0.0
        %544 = vmatpush1.msra.mxu0 0.0
        %545 = vmatprep.subr.mxu0 0.0
        %546 = vmatpush1.msra.mxu0 0.0
        %547 = vmatprep.subr.mxu0 0.0
        %548 = vmatpush1.msra.mxu0 0.0
        %549 = vmatprep.mubr.f32.mxu0 0.0
        %550 = vmatmul.mubr.f32.gmra.mrb[0].mxu0 %v483
        %v551 = vpop.f32.mrb[0].mxu0
        %v552 = vadd.f32 %v365, %v551
        %v553 = vpop.f32.mrb[0].mxu0
        %554 = vdwg.mxu0
        %v555 = vxor.u32 %v552, 2147483648
        %v556 = vmul.f32 %v555, 1.442695
        %v557 = vpow.pop %v556
        %v558 = vadd.f32 %v557, 1.0
        %v559 = vrcp.pop %v558
        %v560 = vmul.f32 1.0, %v559
        %v561 = vtanh.pop %v552
        %v562 = vmul.f32 %v560, %v474
        %564 = vrot.lane.b32.xlu0 %v561, 64
        %v565 = vpop.permute.xlu0 %564
        %v567 = vmul.f32 %v560, %v565
        %569 = vrot.lane.b32.xlu0 %v567, 32
        %v570 = vpop.permute.xlu0 %569
        %v572 = vadd.f32 %v562, %v570
        %v573 = vtanh.pop %v572
        %575 = vrot.lane.b32.xlu0 %v573, 64
        %v576 = vpop.permute.xlu0 %575
        %v578 = vmul.f32 %v560, %v576
        %vm579 = vcmp.gt.s32.totalorder %v358, 1
        %v580 = vsel %vm579, 1, 0
        %581 = vset.pattern.permute.xlu0 0
        %582 = vperm.xlu0 %581, %v580
        %v583 = vpop.permute.xlu0 %582
        %vm584 = vcmp.eq.s32.totalorder %v583, 1
        %v585 = vsel %vm584, %v578, %v473
        %v586 = vsel %vm584, %v572, %v474
        %s587 = scalar_lea.vmem %s341, 4
        %v588 = vld [vmem:[%s587] sm:$0x3]
        %590 = vrot.lane.b32.xlu0 %v585, 48
        %v591 = vpop.permute.xlu0 %590
        %v593 = vsel %vm367, %v588, %v591
        %v595 = vsel %vm369, %v593, 0
        %597 = vmatprep.subr.mxu0 0.0
        %598 = vmatpush1.msra.mxu0 %v359
        %599 = vmatprep.subr.mxu0 0.0
        %600 = vmatpush1.msra.mxu0 %v360
        %601 = vmatprep.subr.mxu0 0.0
        %602 = vmatpush1.msra.mxu0 %v361
        %603 = vmatprep.subr.mxu0 0.0
        %604 = vmatpush1.msra.mxu0 %v362
        %605 = vmatprep.subr.mxu0 0.0
        %606 = vmatpush1.msra.mxu0 %v363
        %607 = vmatprep.subr.mxu0 0.0
        %608 = vmatpush1.msra.mxu0 %v364
        %609 = vmatprep.subr.mxu0 0.0
        %610 = vmatpush1.msra.mxu0 0.0
        %611 = vmatprep.subr.mxu0 0.0
        %612 = vmatpush1.msra.mxu0 0.0
        %613 = vmatprep.subr.mxu0 0.0
        %614 = vmatpush1.msra.mxu0 0.0
        %615 = vmatprep.subr.mxu0 0.0
        %616 = vmatpush1.msra.mxu0 0.0
        %617 = vmatprep.subr.mxu0 0.0
        %618 = vmatpush1.msra.mxu0 0.0
        %619 = vmatprep.subr.mxu0 0.0
        %620 = vmatpush1.msra.mxu0 0.0
        %621 = vmatprep.subr.mxu0 0.0
        %622 = vmatpush1.msra.mxu0 0.0
        %623 = vmatprep.subr.mxu0 0.0
        %624 = vmatpush1.msra.mxu0 0.0
        %625 = vmatprep.subr.mxu0 0.0
        %626 = vmatpush1.msra.mxu0 0.0
        %627 = vmatprep.subr.mxu0 0.0
        %628 = vmatpush1.msra.mxu0 0.0
        %629 = vmatprep.subr.mxu0 0.0
        %630 = vmatpush1.msra.mxu0 0.0
        %631 = vmatprep.subr.mxu0 0.0
        %632 = vmatpush1.msra.mxu0 0.0
        %633 = vmatprep.subr.mxu0 0.0
        %634 = vmatpush1.msra.mxu0 0.0
        %635 = vmatprep.subr.mxu0 0.0
        %636 = vmatpush1.msra.mxu0 0.0
        %637 = vmatprep.subr.mxu0 0.0
        %638 = vmatpush1.msra.mxu0 0.0
        %639 = vmatprep.subr.mxu0 0.0
        %640 = vmatpush1.msra.mxu0 0.0
        %641 = vmatprep.subr.mxu0 0.0
        %642 = vmatpush1.msra.mxu0 0.0
        %643 = vmatprep.subr.mxu0 0.0
        %644 = vmatpush1.msra.mxu0 0.0
        %645 = vmatprep.subr.mxu0 0.0
        %646 = vmatpush1.msra.mxu0 0.0
        %647 = vmatprep.subr.mxu0 0.0
        %648 = vmatpush1.msra.mxu0 0.0
        %649 = vmatprep.subr.mxu0 0.0
        %650 = vmatpush1.msra.mxu0 0.0
        %651 = vmatprep.subr.mxu0 0.0
        %652 = vmatpush1.msra.mxu0 0.0
        %653 = vmatprep.subr.mxu0 0.0
        %654 = vmatpush1.msra.mxu0 0.0
        %655 = vmatprep.subr.mxu0 0.0
        %656 = vmatpush1.msra.mxu0 0.0
        %657 = vmatprep.subr.mxu0 0.0
        %658 = vmatpush1.msra.mxu0 0.0
        %659 = vmatprep.subr.mxu0 0.0
        %660 = vmatpush1.msra.mxu0 0.0
        %661 = vmatprep.mubr.f32.mxu0 0.0
        %662 = vmatmul.mubr.f32.gmra.mrb[0].mxu0 %v595
        %v663 = vpop.f32.mrb[0].mxu0
        %v664 = vadd.f32 %v365, %v663
        %v665 = vpop.f32.mrb[0].mxu0
        %666 = vdwg.mxu0
        %v667 = vxor.u32 %v664, 2147483648
        %v668 = vmul.f32 %v667, 1.442695
        %v669 = vpow.pop %v668
        %v670 = vadd.f32 %v669, 1.0
        %v671 = vrcp.pop %v670
        %v672 = vmul.f32 1.0, %v671
        %v673 = vtanh.pop %v664
        %v674 = vmul.f32 %v672, %v586
        %676 = vrot.lane.b32.xlu0 %v673, 64
        %v677 = vpop.permute.xlu0 %676
        %v679 = vmul.f32 %v672, %v677
        %681 = vrot.lane.b32.xlu0 %v679, 32
        %v682 = vpop.permute.xlu0 %681
        %v684 = vadd.f32 %v674, %v682
        %v685 = vtanh.pop %v684
        %687 = vrot.lane.b32.xlu0 %v685, 64
        %v688 = vpop.permute.xlu0 %687
        %v690 = vmul.f32 %v672, %v688
        %vm691 = vcmp.gt.s32.totalorder %v358, 2
        %v692 = vsel %vm691, 1, 0
        %693 = vset.pattern.permute.xlu0 0
        %694 = vperm.xlu0 %693, %v692
        %v695 = vpop.permute.xlu0 %694
        %vm696 = vcmp.eq.s32.totalorder %v695, 1
        %v697 = vsel %vm696, %v690, %v585
        %v698 = vsel %vm696, %v684, %v586
        %s699 = scalar_lea.vmem %s341, 6
        %v700 = vld [vmem:[%s699] sm:$0x3]
        %702 = vrot.lane.b32.xlu0 %v697, 48
        %v703 = vpop.permute.xlu0 %702
        %v705 = vsel %vm367, %v700, %v703
        %v707 = vsel %vm369, %v705, 0
        %709 = vmatprep.subr.mxu0 0.0
        %710 = vmatpush1.msra.mxu0 %v359
        %711 = vmatprep.subr.mxu0 0.0
        %712 = vmatpush1.msra.mxu0 %v360
        %713 = vmatprep.subr.mxu0 0.0
        %714 = vmatpush1.msra.mxu0 %v361
        %715 = vmatprep.subr.mxu0 0.0
        %716 = vmatpush1.msra.mxu0 %v362
        %717 = vmatprep.subr.mxu0 0.0
        %718 = vmatpush1.msra.mxu0 %v363
        %719 = vmatprep.subr.mxu0 0.0
        %720 = vmatpush1.msra.mxu0 %v364
        %721 = vmatprep.subr.mxu0 0.0
        %722 = vmatpush1.msra.mxu0 0.0
        %723 = vmatprep.subr.mxu0 0.0
        %724 = vmatpush1.msra.mxu0 0.0
        %725 = vmatprep.subr.mxu0 0.0
        %726 = vmatpush1.msra.mxu0 0.0
        %727 = vmatprep.subr.mxu0 0.0
        %728 = vmatpush1.msra.mxu0 0.0
        %729 = vmatprep.subr.mxu0 0.0
        %730 = vmatpush1.msra.mxu0 0.0
        %731 = vmatprep.subr.mxu0 0.0
        %732 = vmatpush1.msra.mxu0 0.0
        %733 = vmatprep.subr.mxu0 0.0
        %734 = vmatpush1.msra.mxu0 0.0
        %735 = vmatprep.subr.mxu0 0.0
        %736 = vmatpush1.msra.mxu0 0.0
        %737 = vmatprep.subr.mxu0 0.0
        %738 = vmatpush1.msra.mxu0 0.0
        %739 = vmatprep.subr.mxu0 0.0
        %740 = vmatpush1.msra.mxu0 0.0
        %741 = vmatprep.subr.mxu0 0.0
        %742 = vmatpush1.msra.mxu0 0.0
        %743 = vmatprep.subr.mxu0 0.0
        %744 = vmatpush1.msra.mxu0 0.0
        %745 = vmatprep.subr.mxu0 0.0
        %746 = vmatpush1.msra.mxu0 0.0
        %747 = vmatprep.subr.mxu0 0.0
        %748 = vmatpush1.msra.mxu0 0.0
        %749 = vmatprep.subr.mxu0 0.0
        %750 = vmatpush1.msra.mxu0 0.0
        %751 = vmatprep.subr.mxu0 0.0
        %752 = vmatpush1.msra.mxu0 0.0
        %753 = vmatprep.subr.mxu0 0.0
        %754 = vmatpush1.msra.mxu0 0.0
        %755 = vmatprep.subr.mxu0 0.0
        %756 = vmatpush1.msra.mxu0 0.0
        %757 = vmatprep.subr.mxu0 0.0
        %758 = vmatpush1.msra.mxu0 0.0
        %759 = vmatprep.subr.mxu0 0.0
        %760 = vmatpush1.msra.mxu0 0.0
        %761 = vmatprep.subr.mxu0 0.0
        %762 = vmatpush1.msra.mxu0 0.0
        %763 = vmatprep.subr.mxu0 0.0
        %764 = vmatpush1.msra.mxu0 0.0
        %765 = vmatprep.subr.mxu0 0.0
        %766 = vmatpush1.msra.mxu0 0.0
        %767 = vmatprep.subr.mxu0 0.0
        %768 = vmatpush1.msra.mxu0 0.0
        %769 = vmatprep.subr.mxu0 0.0
        %770 = vmatpush1.msra.mxu0 0.0
        %771 = vmatprep.subr.mxu0 0.0
        %772 = vmatpush1.msra.mxu0 0.0
        %773 = vmatprep.mubr.f32.mxu0 0.0
        %774 = vmatmul.mubr.f32.gmra.mrb[0].mxu0 %v707
        %v775 = vpop.f32.mrb[0].mxu0
        %v776 = vadd.f32 %v365, %v775
        %v777 = vpop.f32.mrb[0].mxu0
        %778 = vdwg.mxu0
        %v779 = vxor.u32 %v776, 2147483648
        %v780 = vmul.f32 %v779, 1.442695
        %v781 = vpow.pop %v780
        %v782 = vadd.f32 %v781, 1.0
        %v783 = vrcp.pop %v782
        %v784 = vmul.f32 1.0, %v783
        %v785 = vtanh.pop %v776
        %v786 = vmul.f32 %v784, %v698
        %788 = vrot.lane.b32.xlu0 %v785, 64
        %v789 = vpop.permute.xlu0 %788
        %v791 = vmul.f32 %v784, %v789
        %793 = vrot.lane.b32.xlu0 %v791, 32
        %v794 = vpop.permute.xlu0 %793
        %v796 = vadd.f32 %v786, %v794
        %v797 = vtanh.pop %v796
        %799 = vrot.lane.b32.xlu0 %v797, 64
        %v800 = vpop.permute.xlu0 %799
        %v802 = vmul.f32 %v784, %v800
        %vm803 = vcmp.gt.s32.totalorder %v358, 3
        %v804 = vsel %vm803, 1, 0
        %805 = vset.pattern.permute.xlu0 0
        %806 = vperm.xlu0 %805, %v804
        %v807 = vpop.permute.xlu0 %806
        %vm808 = vcmp.eq.s32.totalorder %v807, 1
        %v809 = vsel %vm808, %v802, %v697
        %v810 = vsel %vm808, %v796, %v698
        %s811 = scalar_lea.vmem %s341, 8
        %v812 = vld [vmem:[%s811] sm:$0x3]
        %814 = vrot.lane.b32.xlu0 %v809, 48
        %v815 = vpop.permute.xlu0 %814
        %v817 = vsel %vm367, %v812, %v815
        %v819 = vsel %vm369, %v817, 0
        %821 = vmatprep.subr.mxu0 0.0
        %822 = vmatpush1.msra.mxu0 %v359
        %823 = vmatprep.subr.mxu0 0.0
        %824 = vmatpush1.msra.mxu0 %v360
        %825 = vmatprep.subr.mxu0 0.0
        %826 = vmatpush1.msra.mxu0 %v361
        %827 = vmatprep.subr.mxu0 0.0
        %828 = vmatpush1.msra.mxu0 %v362
        %829 = vmatprep.subr.mxu0 0.0
        %830 = vmatpush1.msra.mxu0 %v363
        %831 = vmatprep.subr.mxu0 0.0
        %832 = vmatpush1.msra.mxu0 %v364
        %833 = vmatprep.subr.mxu0 0.0
        %834 = vmatpush1.msra.mxu0 0.0
        %835 = vmatprep.subr.mxu0 0.0
        %836 = vmatpush1.msra.mxu0 0.0
        %837 = vmatprep.subr.mxu0 0.0
        %838 = vmatpush1.msra.mxu0 0.0
        %839 = vmatprep.subr.mxu0 0.0
        %840 = vmatpush1.msra.mxu0 0.0
        %841 = vmatprep.subr.mxu0 0.0
        %842 = vmatpush1.msra.mxu0 0.0
        %843 = vmatprep.subr.mxu0 0.0
        %844 = vmatpush1.msra.mxu0 0.0
        %845 = vmatprep.subr.mxu0 0.0
        %846 = vmatpush1.msra.mxu0 0.0
        %847 = vmatprep.subr.mxu0 0.0
        %848 = vmatpush1.msra.mxu0 0.0
        %849 = vmatprep.subr.mxu0 0.0
        %850 = vmatpush1.msra.mxu0 0.0
        %851 = vmatprep.subr.mxu0 0.0
        %852 = vmatpush1.msra.mxu0 0.0
        %853 = vmatprep.subr.mxu0 0.0
        %854 = vmatpush1.msra.mxu0 0.0
        %855 = vmatprep.subr.mxu0 0.0
        %856 = vmatpush1.msra.mxu0 0.0
        %857 = vmatprep.subr.mxu0 0.0
        %858 = vmatpush1.msra.mxu0 0.0
        %859 = vmatprep.subr.mxu0 0.0
        %860 = vmatpush1.msra.mxu0 0.0
        %861 = vmatprep.subr.mxu0 0.0
        %862 = vmatpush1.msra.mxu0 0.0
        %863 = vmatprep.subr.mxu0 0.0
        %864 = vmatpush1.msra.mxu0 0.0
        %865 = vmatprep.subr.mxu0 0.0
        %866 = vmatpush1.msra.mxu0 0.0
        %867 = vmatprep.subr.mxu0 0.0
        %868 = vmatpush1.msra.mxu0 0.0
        %869 = vmatprep.subr.mxu0 0.0
        %870 = vmatpush1.msra.mxu0 0.0
        %871 = vmatprep.subr.mxu0 0.0
        %872 = vmatpush1.msra.mxu0 0.0
        %873 = vmatprep.subr.mxu0 0.0
        %874 = vmatpush1.msra.mxu0 0.0
        %875 = vmatprep.subr.mxu0 0.0
        %876 = vmatpush1.msra.mxu0 0.0
        %877 = vmatprep.subr.mxu0 0.0
        %878 = vmatpush1.msra.mxu0 0.0
        %879 = vmatprep.subr.mxu0 0.0
        %880 = vmatpush1.msra.mxu0 0.0
        %881 = vmatprep.subr.mxu0 0.0
        %882 = vmatpush1.msra.mxu0 0.0
        %883 = vmatprep.subr.mxu0 0.0
        %884 = vmatpush1.msra.mxu0 0.0
        %885 = vmatprep.mubr.f32.mxu0 0.0
        %886 = vmatmul.mubr.f32.gmra.mrb[0].mxu0 %v819
        %v887 = vpop.f32.mrb[0].mxu0
        %v888 = vadd.f32 %v365, %v887
        %v889 = vpop.f32.mrb[0].mxu0
        %890 = vdwg.mxu0
        %v891 = vxor.u32 %v888, 2147483648
        %v892 = vmul.f32 %v891, 1.442695
        %v893 = vpow.pop %v892
        %v894 = vadd.f32 %v893, 1.0
        %v895 = vrcp.pop %v894
        %v896 = vmul.f32 1.0, %v895
        %v897 = vtanh.pop %v888
        %v898 = vmul.f32 %v896, %v810
        %900 = vrot.lane.b32.xlu0 %v897, 64
        %v901 = vpop.permute.xlu0 %900
        %v903 = vmul.f32 %v896, %v901
        %905 = vrot.lane.b32.xlu0 %v903, 32
        %v906 = vpop.permute.xlu0 %905
        %v908 = vadd.f32 %v898, %v906
        %v909 = vtanh.pop %v908
        %911 = vrot.lane.b32.xlu0 %v909, 64
        %v912 = vpop.permute.xlu0 %911
        %v914 = vmul.f32 %v896, %v912
        %vm915 = vcmp.gt.s32.totalorder %v358, 4
        %v916 = vsel %vm915, 1, 0
        %917 = vset.pattern.permute.xlu0 0
        %918 = vperm.xlu0 %917, %v916
        %v919 = vpop.permute.xlu0 %918
        %vm920 = vcmp.eq.s32.totalorder %v919, 1
        %v921 = vsel %vm920, %v914, %v809
        %v922 = vsel %vm920, %v908, %v810
        %s923 = scalar_lea.vmem %s341, 10
        %v924 = vld [vmem:[%s923] sm:$0x3]
        %926 = vrot.lane.b32.xlu0 %v921, 48
        %v927 = vpop.permute.xlu0 %926
        %v929 = vsel %vm367, %v924, %v927
        %v931 = vsel %vm369, %v929, 0
        %933 = vmatprep.subr.mxu0 0.0
        %934 = vmatpush1.msra.mxu0 %v359
        %935 = vmatprep.subr.mxu0 0.0
        %936 = vmatpush1.msra.mxu0 %v360
        %937 = vmatprep.subr.mxu0 0.0
        %938 = vmatpush1.msra.mxu0 %v361
        %939 = vmatprep.subr.mxu0 0.0
        %940 = vmatpush1.msra.mxu0 %v362
        %941 = vmatprep.subr.mxu0 0.0
        %942 = vmatpush1.msra.mxu0 %v363
        %943 = vmatprep.subr.mxu0 0.0
        %944 = vmatpush1.msra.mxu0 %v364
        %945 = vmatprep.subr.mxu0 0.0
        %946 = vmatpush1.msra.mxu0 0.0
        %947 = vmatprep.subr.mxu0 0.0
        %948 = vmatpush1.msra.mxu0 0.0
        %949 = vmatprep.subr.mxu0 0.0
        %950 = vmatpush1.msra.mxu0 0.0
        %951 = vmatprep.subr.mxu0 0.0
        %952 = vmatpush1.msra.mxu0 0.0
        %953 = vmatprep.subr.mxu0 0.0
        %954 = vmatpush1.msra.mxu0 0.0
        %955 = vmatprep.subr.mxu0 0.0
        %956 = vmatpush1.msra.mxu0 0.0
        %957 = vmatprep.subr.mxu0 0.0
        %958 = vmatpush1.msra.mxu0 0.0
        %959 = vmatprep.subr.mxu0 0.0
        %960 = vmatpush1.msra.mxu0 0.0
        %961 = vmatprep.subr.mxu0 0.0
        %962 = vmatpush1.msra.mxu0 0.0
        %963 = vmatprep.subr.mxu0 0.0
        %964 = vmatpush1.msra.mxu0 0.0
        %965 = vmatprep.subr.mxu0 0.0
        %966 = vmatpush1.msra.mxu0 0.0
        %967 = vmatprep.subr.mxu0 0.0
        %968 = vmatpush1.msra.mxu0 0.0
        %969 = vmatprep.subr.mxu0 0.0
        %970 = vmatpush1.msra.mxu0 0.0
        %971 = vmatprep.subr.mxu0 0.0
        %972 = vmatpush1.msra.mxu0 0.0
        %973 = vmatprep.subr.mxu0 0.0
        %974 = vmatpush1.msra.mxu0 0.0
        %975 = vmatprep.subr.mxu0 0.0
        %976 = vmatpush1.msra.mxu0 0.0
        %977 = vmatprep.subr.mxu0 0.0
        %978 = vmatpush1.msra.mxu0 0.0
        %979 = vmatprep.subr.mxu0 0.0
        %980 = vmatpush1.msra.mxu0 0.0
        %981 = vmatprep.subr.mxu0 0.0
        %982 = vmatpush1.msra.mxu0 0.0
        %983 = vmatprep.subr.mxu0 0.0
        %984 = vmatpush1.msra.mxu0 0.0
        %985 = vmatprep.subr.mxu0 0.0
        %986 = vmatpush1.msra.mxu0 0.0
        %987 = vmatprep.subr.mxu0 0.0
        %988 = vmatpush1.msra.mxu0 0.0
        %989 = vmatprep.subr.mxu0 0.0
        %990 = vmatpush1.msra.mxu0 0.0
        %991 = vmatprep.subr.mxu0 0.0
        %992 = vmatpush1.msra.mxu0 0.0
        %993 = vmatprep.subr.mxu0 0.0
        %994 = vmatpush1.msra.mxu0 0.0
        %995 = vmatprep.subr.mxu0 0.0
        %996 = vmatpush1.msra.mxu0 0.0
        %997 = vmatprep.mubr.f32.mxu0 0.0
        %998 = vmatmul.mubr.f32.gmra.mrb[0].mxu0 %v931
        %v999 = vpop.f32.mrb[0].mxu0
        %v1000 = vadd.f32 %v365, %v999
        %v1001 = vpop.f32.mrb[0].mxu0
        %1002 = vdwg.mxu0
        %v1003 = vxor.u32 %v1000, 2147483648
        %v1004 = vmul.f32 %v1003, 1.442695
        %v1005 = vpow.pop %v1004
        %v1006 = vadd.f32 %v1005, 1.0
        %v1007 = vrcp.pop %v1006
        %v1008 = vmul.f32 1.0, %v1007
        %v1009 = vtanh.pop %v1000
        %v1010 = vmul.f32 %v1008, %v922
        %1012 = vrot.lane.b32.xlu0 %v1009, 64
        %v1013 = vpop.permute.xlu0 %1012
        %v1015 = vmul.f32 %v1008, %v1013
        %1017 = vrot.lane.b32.xlu0 %v1015, 32
        %v1018 = vpop.permute.xlu0 %1017
        %v1020 = vadd.f32 %v1010, %v1018
        %v1021 = vtanh.pop %v1020
        %1023 = vrot.lane.b32.xlu0 %v1021, 64
        %v1024 = vpop.permute.xlu0 %1023
        %v1026 = vmul.f32 %v1008, %v1024
        %vm1027 = vcmp.gt.s32.totalorder %v358, 5
        %v1028 = vsel %vm1027, 1, 0
        %1029 = vset.pattern.permute.xlu0 0
        %1030 = vperm.xlu0 %1029, %v1028
        %v1031 = vpop.permute.xlu0 %1030
        %vm1032 = vcmp.eq.s32.totalorder %v1031, 1
        %v1033 = vsel %vm1032, %v1026, %v921
        %v1034 = vsel %vm1032, %v1020, %v922
        %s1035 = scalar_lea.vmem %s341, 12
        %v1036 = vld [vmem:[%s1035] sm:$0x3]
        %1038 = vrot.lane.b32.xlu0 %v1033, 48
        %v1039 = vpop.permute.xlu0 %1038
        %v1041 = vsel %vm367, %v1036, %v1039
        %v1043 = vsel %vm369, %v1041, 0
        %1045 = vmatprep.subr.mxu0 0.0
        %1046 = vmatpush1.msra.mxu0 %v359
        %1047 = vmatprep.subr.mxu0 0.0
        %1048 = vmatpush1.msra.mxu0 %v360
        %1049 = vmatprep.subr.mxu0 0.0
        %1050 = vmatpush1.msra.mxu0 %v361
        %1051 = vmatprep.subr.mxu0 0.0
        %1052 = vmatpush1.msra.mxu0 %v362
        %1053 = vmatprep.subr.mxu0 0.0
        %1054 = vmatpush1.msra.mxu0 %v363
        %1055 = vmatprep.subr.mxu0 0.0
        %1056 = vmatpush1.msra.mxu0 %v364
        %1057 = vmatprep.subr.mxu0 0.0
        %1058 = vmatpush1.msra.mxu0 0.0
        %1059 = vmatprep.subr.mxu0 0.0
        %1060 = vmatpush1.msra.mxu0 0.0
        %1061 = vmatprep.subr.mxu0 0.0
        %1062 = vmatpush1.msra.mxu0 0.0
        %1063 = vmatprep.subr.mxu0 0.0
        %1064 = vmatpush1.msra.mxu0 0.0
        %1065 = vmatprep.subr.mxu0 0.0
        %1066 = vmatpush1.msra.mxu0 0.0
        %1067 = vmatprep.subr.mxu0 0.0
        %1068 = vmatpush1.msra.mxu0 0.0
        %1069 = vmatprep.subr.mxu0 0.0
        %1070 = vmatpush1.msra.mxu0 0.0
        %1071 = vmatprep.subr.mxu0 0.0
        %1072 = vmatpush1.msra.mxu0 0.0
        %1073 = vmatprep.subr.mxu0 0.0
        %1074 = vmatpush1.msra.mxu0 0.0
        %1075 = vmatprep.subr.mxu0 0.0
        %1076 = vmatpush1.msra.mxu0 0.0
        %1077 = vmatprep.subr.mxu0 0.0
        %1078 = vmatpush1.msra.mxu0 0.0
        %1079 = vmatprep.subr.mxu0 0.0
        %1080 = vmatpush1.msra.mxu0 0.0
        %1081 = vmatprep.subr.mxu0 0.0
        %1082 = vmatpush1.msra.mxu0 0.0
        %1083 = vmatprep.subr.mxu0 0.0
        %1084 = vmatpush1.msra.mxu0 0.0
        %1085 = vmatprep.subr.mxu0 0.0
        %1086 = vmatpush1.msra.mxu0 0.0
        %1087 = vmatprep.subr.mxu0 0.0
        %1088 = vmatpush1.msra.mxu0 0.0
        %1089 = vmatprep.subr.mxu0 0.0
        %1090 = vmatpush1.msra.mxu0 0.0
        %1091 = vmatprep.subr.mxu0 0.0
        %1092 = vmatpush1.msra.mxu0 0.0
        %1093 = vmatprep.subr.mxu0 0.0
        %1094 = vmatpush1.msra.mxu0 0.0
        %1095 = vmatprep.subr.mxu0 0.0
        %1096 = vmatpush1.msra.mxu0 0.0
        %1097 = vmatprep.subr.mxu0 0.0
        %1098 = vmatpush1.msra.mxu0 0.0
        %1099 = vmatprep.subr.mxu0 0.0
        %1100 = vmatpush1.msra.mxu0 0.0
        %1101 = vmatprep.subr.mxu0 0.0
        %1102 = vmatpush1.msra.mxu0 0.0
        %1103 = vmatprep.subr.mxu0 0.0
        %1104 = vmatpush1.msra.mxu0 0.0
        %1105 = vmatprep.subr.mxu0 0.0
        %1106 = vmatpush1.msra.mxu0 0.0
        %1107 = vmatprep.subr.mxu0 0.0
        %1108 = vmatpush1.msra.mxu0 0.0
        %1109 = vmatprep.mubr.f32.mxu0 0.0
        %1110 = vmatmul.mubr.f32.gmra.mrb[0].mxu0 %v1043
        %v1111 = vpop.f32.mrb[0].mxu0
        %v1112 = vadd.f32 %v365, %v1111
        %v1113 = vpop.f32.mrb[0].mxu0
        %1114 = vdwg.mxu0
        %v1115 = vxor.u32 %v1112, 2147483648
        %v1116 = vmul.f32 %v1115, 1.442695
        %v1117 = vpow.pop %v1116
        %v1118 = vadd.f32 %v1117, 1.0
        %v1119 = vrcp.pop %v1118
        %v1120 = vmul.f32 1.0, %v1119
        %v1121 = vtanh.pop %v1112
        %v1122 = vmul.f32 %v1120, %v1034
        %1124 = vrot.lane.b32.xlu0 %v1121, 64
        %v1125 = vpop.permute.xlu0 %1124
        %v1127 = vmul.f32 %v1120, %v1125
        %1129 = vrot.lane.b32.xlu0 %v1127, 32
        %v1130 = vpop.permute.xlu0 %1129
        %v1132 = vadd.f32 %v1122, %v1130
        %v1133 = vtanh.pop %v1132
        %1135 = vrot.lane.b32.xlu0 %v1133, 64
        %v1136 = vpop.permute.xlu0 %1135
        %v1138 = vmul.f32 %v1120, %v1136
        %vm1139 = vcmp.gt.s32.totalorder %v358, 6
        %v1140 = vsel %vm1139, 1, 0
        %1141 = vset.pattern.permute.xlu0 0
        %1142 = vperm.xlu0 %1141, %v1140
        %v1143 = vpop.permute.xlu0 %1142
        %vm1144 = vcmp.eq.s32.totalorder %v1143, 1
        %v1145 = vsel %vm1144, %v1138, %v1033
        %v1146 = vsel %vm1144, %v1132, %v1034
        %s1147 = scalar_lea.vmem %s341, 14
        %v1148 = vld [vmem:[%s1147] sm:$0x3]
        %1150 = vrot.lane.b32.xlu0 %v1145, 48
        %v1151 = vpop.permute.xlu0 %1150
        %v1153 = vsel %vm367, %v1148, %v1151
        %v1155 = vsel %vm369, %v1153, 0
        %1157 = vmatprep.subr.mxu0 0.0
        %1158 = vmatpush1.msra.mxu0 %v359
        %1159 = vmatprep.subr.mxu0 0.0
        %1160 = vmatpush1.msra.mxu0 %v360
        %1161 = vmatprep.subr.mxu0 0.0
        %1162 = vmatpush1.msra.mxu0 %v361
        %1163 = vmatprep.subr.mxu0 0.0
        %1164 = vmatpush1.msra.mxu0 %v362
        %1165 = vmatprep.subr.mxu0 0.0
        %1166 = vmatpush1.msra.mxu0 %v363
        %1167 = vmatprep.subr.mxu0 0.0
        %1168 = vmatpush1.msra.mxu0 %v364
        %1169 = vmatprep.subr.mxu0 0.0
        %1170 = vmatpush1.msra.mxu0 0.0
        %1171 = vmatprep.subr.mxu0 0.0
        %1172 = vmatpush1.msra.mxu0 0.0
        %1173 = vmatprep.subr.mxu0 0.0
        %1174 = vmatpush1.msra.mxu0 0.0
        %1175 = vmatprep.subr.mxu0 0.0
        %1176 = vmatpush1.msra.mxu0 0.0
        %1177 = vmatprep.subr.mxu0 0.0
        %1178 = vmatpush1.msra.mxu0 0.0
        %1179 = vmatprep.subr.mxu0 0.0
        %1180 = vmatpush1.msra.mxu0 0.0
        %1181 = vmatprep.subr.mxu0 0.0
        %1182 = vmatpush1.msra.mxu0 0.0
        %1183 = vmatprep.subr.mxu0 0.0
        %1184 = vmatpush1.msra.mxu0 0.0
        %1185 = vmatprep.subr.mxu0 0.0
        %1186 = vmatpush1.msra.mxu0 0.0
        %1187 = vmatprep.subr.mxu0 0.0
        %1188 = vmatpush1.msra.mxu0 0.0
        %1189 = vmatprep.subr.mxu0 0.0
        %1190 = vmatpush1.msra.mxu0 0.0
        %1191 = vmatprep.subr.mxu0 0.0
        %1192 = vmatpush1.msra.mxu0 0.0
        %1193 = vmatprep.subr.mxu0 0.0
        %1194 = vmatpush1.msra.mxu0 0.0
        %1195 = vmatprep.subr.mxu0 0.0
        %1196 = vmatpush1.msra.mxu0 0.0
        %1197 = vmatprep.subr.mxu0 0.0
        %1198 = vmatpush1.msra.mxu0 0.0
        %1199 = vmatprep.subr.mxu0 0.0
        %1200 = vmatpush1.msra.mxu0 0.0
        %1201 = vmatprep.subr.mxu0 0.0
        %1202 = vmatpush1.msra.mxu0 0.0
        %1203 = vmatprep.subr.mxu0 0.0
        %1204 = vmatpush1.msra.mxu0 0.0
        %1205 = vmatprep.subr.mxu0 0.0
        %1206 = vmatpush1.msra.mxu0 0.0
        %1207 = vmatprep.subr.mxu0 0.0
        %1208 = vmatpush1.msra.mxu0 0.0
        %1209 = vmatprep.subr.mxu0 0.0
        %1210 = vmatpush1.msra.mxu0 0.0
        %1211 = vmatprep.subr.mxu0 0.0
        %1212 = vmatpush1.msra.mxu0 0.0
        %1213 = vmatprep.subr.mxu0 0.0
        %1214 = vmatpush1.msra.mxu0 0.0
        %1215 = vmatprep.subr.mxu0 0.0
        %1216 = vmatpush1.msra.mxu0 0.0
        %1217 = vmatprep.subr.mxu0 0.0
        %1218 = vmatpush1.msra.mxu0 0.0
        %1219 = vmatprep.subr.mxu0 0.0
        %1220 = vmatpush1.msra.mxu0 0.0
        %1221 = vmatprep.mubr.f32.mxu0 0.0
        %1222 = vmatmul.mubr.f32.gmra.mrb[0].mxu0 %v1155
        %v1223 = vpop.f32.mrb[0].mxu0
        %v1224 = vadd.f32 %v365, %v1223
        %v1225 = vpop.f32.mrb[0].mxu0
        %1226 = vdwg.mxu0
        %v1227 = vxor.u32 %v1224, 2147483648
        %v1228 = vmul.f32 %v1227, 1.442695
        %v1229 = vpow.pop %v1228
        %v1230 = vadd.f32 %v1229, 1.0
        %v1231 = vrcp.pop %v1230
        %v1232 = vmul.f32 1.0, %v1231
        %v1233 = vtanh.pop %v1224
        %v1234 = vmul.f32 %v1232, %v1146
        %1236 = vrot.lane.b32.xlu0 %v1233, 64
        %v1237 = vpop.permute.xlu0 %1236
        %v1239 = vmul.f32 %v1232, %v1237
        %1241 = vrot.lane.b32.xlu0 %v1239, 32
        %v1242 = vpop.permute.xlu0 %1241
        %v1244 = vadd.f32 %v1234, %v1242
        %v1245 = vtanh.pop %v1244
        %1247 = vrot.lane.b32.xlu0 %v1245, 64
        %v1248 = vpop.permute.xlu0 %1247
        %v1250 = vmul.f32 %v1232, %v1248
        %vm1251 = vcmp.gt.s32.totalorder %v358, 7
        %v1252 = vsel %vm1251, 1, 0
        %1253 = vset.pattern.permute.xlu0 0
        %1254 = vperm.xlu0 %1253, %v1252
        %v1255 = vpop.permute.xlu0 %1254
        %vm1256 = vcmp.eq.s32.totalorder %v1255, 1
        %v1257 = vsel %vm1256, %v1250, %v1145
        %v1258 = vld [vmem:[%s354] sm:$0xff]
        %v1259 = vld [vmem:[%s354 + $0x8] sm:$0xff]
        %v1260 = vld [vmem:[%s354 + $0x10] sm:$0xff]
        %v1261 = vld [vmem:[%s354 + $0x18] sm:$0xff]
        %v1262 = vld [vmem:[%s357] sm:$0x1]
        %v1264 = vlaneseq
        %v1265 = vshrl.u32 %v1264, 7
        %v1266 = vsub.s32 0, %v1265
        %v1267 = vrot.slane %v1262, %v1266
        %1270 = vrot.lane.b32.xlu0 %v1257, 32
        %v1271 = vpop.permute.xlu0 %1270
        %vm1272 = vcmask 261120
        %v1273 = vsel %vm1272, %v1271, 0
        %1275 = vmatprep.subr.mxu0 0.0
        %1276 = vmatpush1.msra.mxu0 %v1258
        %1277 = vmatprep.subr.mxu0 0.0
        %1278 = vmatpush1.msra.mxu0 %v1259
        %1279 = vmatprep.subr.mxu0 0.0
        %1280 = vmatpush1.msra.mxu0 %v1260
        %1281 = vmatprep.subr.mxu0 0.0
        %1282 = vmatpush1.msra.mxu0 %v1261
        %1283 = vmatprep.subr.mxu0 0.0
        %1284 = vmatpush1.msra.mxu0 0.0
        %1285 = vmatprep.subr.mxu0 0.0
        %1286 = vmatpush1.msra.mxu0 0.0
        %1287 = vmatprep.subr.mxu0 0.0
        %1288 = vmatpush1.msra.mxu0 0.0
        %1289 = vmatprep.subr.mxu0 0.0
        %1290 = vmatpush1.msra.mxu0 0.0
        %1291 = vmatprep.subr.mxu0 0.0
        %1292 = vmatpush1.msra.mxu0 0.0
        %1293 = vmatprep.subr.mxu0 0.0
        %1294 = vmatpush1.msra.mxu0 0.0
        %1295 = vmatprep.subr.mxu0 0.0
        %1296 = vmatpush1.msra.mxu0 0.0
        %1297 = vmatprep.subr.mxu0 0.0
        %1298 = vmatpush1.msra.mxu0 0.0
        %1299 = vmatprep.subr.mxu0 0.0
        %1300 = vmatpush1.msra.mxu0 0.0
        %1301 = vmatprep.subr.mxu0 0.0
        %1302 = vmatpush1.msra.mxu0 0.0
        %1303 = vmatprep.subr.mxu0 0.0
        %1304 = vmatpush1.msra.mxu0 0.0
        %1305 = vmatprep.subr.mxu0 0.0
        %1306 = vmatpush1.msra.mxu0 0.0
        %1307 = vmatprep.subr.mxu0 0.0
        %1308 = vmatpush1.msra.mxu0 0.0
        %1309 = vmatprep.subr.mxu0 0.0
        %1310 = vmatpush1.msra.mxu0 0.0
        %1311 = vmatprep.subr.mxu0 0.0
        %1312 = vmatpush1.msra.mxu0 0.0
        %1313 = vmatprep.subr.mxu0 0.0
        %1314 = vmatpush1.msra.mxu0 0.0
        %1315 = vmatprep.subr.mxu0 0.0
        %1316 = vmatpush1.msra.mxu0 0.0
        %1317 = vmatprep.subr.mxu0 0.0
        %1318 = vmatpush1.msra.mxu0 0.0
        %1319 = vmatprep.subr.mxu0 0.0
        %1320 = vmatpush1.msra.mxu0 0.0
        %1321 = vmatprep.subr.mxu0 0.0
        %1322 = vmatpush1.msra.mxu0 0.0
        %1323 = vmatprep.subr.mxu0 0.0
        %1324 = vmatpush1.msra.mxu0 0.0
        %1325 = vmatprep.subr.mxu0 0.0
        %1326 = vmatpush1.msra.mxu0 0.0
        %1327 = vmatprep.subr.mxu0 0.0
        %1328 = vmatpush1.msra.mxu0 0.0
        %1329 = vmatprep.subr.mxu0 0.0
        %1330 = vmatpush1.msra.mxu0 0.0
        %1331 = vmatprep.subr.mxu0 0.0
        %1332 = vmatpush1.msra.mxu0 0.0
        %1333 = vmatprep.subr.mxu0 0.0
        %1334 = vmatpush1.msra.mxu0 0.0
        %1335 = vmatprep.subr.mxu0 0.0
        %1336 = vmatpush1.msra.mxu0 0.0
        %1337 = vmatprep.subr.mxu0 0.0
        %1338 = vmatpush1.msra.mxu0 0.0
        %1339 = vmatprep.mubr.f32.mxu0 0.0
        %1340 = vmatmul.mubr.f32.gmra.mrb[0].mxu0 %v1273
        %v1341 = vpop.f32.mrb[0].mxu0
        %v1342 = vadd.f32 %v1267, %v1341
        %v1343 = vpop.f32.mrb[0].mxu0
        %1344 = vdwg.mxu0
        %vm1345 = vcmask 17408
        %1346 = vst.msk [vmem:[%s336] sm:$0x3] %vm1345, %v1342
        %s1347 = sand.u32 %s187, 1
        %s1348 = scalar_lea.sflag [#allocation4], %s1347
        %s1349 = sand.u32 %s187, 1
        %s1350 = smul.addr %s1349, 2
        %s1351 = scalar_lea.vmem [#allocation5], %s1350
        // Predicated region
        $region49: #{tpu_custom_call.1} parent=43 // pred_check
          %p1352 = pneg %p197
        $region50: #{tpu_custom_call.1} parent=43 // pred_check_branch
          %1354 = sbr.rel (%p1352) target = $region52
        $region51: #{tpu_custom_call.1} parent=43 // pred_region
          %s1356 = ssub.s32 32, 32
          %1357 = vsyncadd %s1348, %s1356
          %s1358 = smul.addr %s23, 32
          %s1359 = scalar_lea.hbm %s6, %s1358
          %s1361 = sshll.u32 %s1351, 4
          %s1362 = int_to_ptr.vmem [resolvable:$true] %s1361
          %1364 = dma.vmem_to_hbm [thread:$0]  %s1362, 32, %s1359, %s1348
        $region52: #{tpu_custom_call.1} parent=43 // pred_fallthru
          _
      $region44: #{tpu_custom_call.1} parent=5 // pred_fallthru
        _
      %p1365 = scmp.le.s32.totalorder 2, %s18
      // Predicated region
      $region53: #{tpu_custom_call.1} parent=5 // pred_check
        %p1366 = pneg %p1365
      $region54: #{tpu_custom_call.1} parent=5 // pred_check_branch
        %1368 = sbr.rel (%p1366) target = $region56
      $region55: #{tpu_custom_call.1} parent=5 // pred_region
        %s1369 = ssub.s32 %s18, 2
        // Predicated region
        $region57: #{tpu_custom_call.1} parent=55 // pred_check
          %p1370 = pneg %p203
        $region58: #{tpu_custom_call.1} parent=55 // pred_check_branch
          %1372 = sbr.rel (%p1370) target = $region60
        $region59: #{tpu_custom_call.1} parent=55 // pred_region
          %s1373 = sand.u32 %s188, 1
          %s1374 = scalar_lea.sflag [#allocation4], %s1373
          %s1375 = sand.u32 %s188, 1
          %s1376 = smul.addr %s1375, 2
          %s1377 = scalar_lea.vmem [#allocation5], %s1376
          %1378 = dma.done %s1374, 32
        $region60: #{tpu_custom_call.1} parent=55 // pred_fallthru
          _
      $region56: #{tpu_custom_call.1} parent=5 // pred_fallthru
        _
    $region6: #{tpu_custom_call.1} parent=1 // loop_footer
      %s22 = sadd.s32 1, %s18
    $region7: #{tpu_custom_call.1} parent=1 // loop_footer_branch
      %17 = sbr.rel target = $region3
    $region8: #{tpu_custom_call.1} parent=1 // loop_exit
      _
    %1379 = vsyncpa [#allocation3], 1
    %s1380 = scalar_lea.sflag [#allocation3], 1
    %1381 = vsyncpa %s1380, 1
    %1382 = vsyncpa [#allocation4], 1
    %s1383 = scalar_lea.sflag [#allocation4], 1
    %1384 = vsyncpa %s1383, 1

</llo_original>
